<compile_context>
chip_gen: v5e
topology: v5e:2x2
jax: 0.10.0
libtpu: 0.0.40
codegen_flags: <defaults>
</compile_context>

<pallas_src>
import functools
import math

import numpy as np
import jax
import jax.numpy as jnp
from jax import lax
from jax.experimental import pallas as pl
from jax.experimental.pallas import tpu as pltpu


# ----------------------------------------------------------------------------------
# In-kernel helpers
# ----------------------------------------------------------------------------------
def _shift_helpers(T):
    """(down, up) row-shift helpers with zero padding at the boundary.

    down(p)[t] = p[t-1] (0 at t=0);  up(p)[t] = p[t+1] (0 at t=T-1).
    The iota is built once per kernel invocation and reused by every conv.
    """
    rows = lax.broadcasted_iota(jnp.int32, (T, 1), 0)

    def down(p):
        return jnp.where(rows > 0, pltpu.roll(p, 1, axis=0), 0.0)

    def up(p):
        return jnp.where(rows < T - 1, pltpu.roll(p, T - 1, axis=0), 0.0)

    return down, up


def _dot(a, w):
    # bf16 (or f32) operands, f32 accumulation on the MXU.
    return jnp.dot(a, w, preferred_element_type=jnp.float32)


def _conv_same(x, w_cat, b, Co, down, up):
    """Conv1d(k3,s1,p1): one (T,C)@(C,3Co) dot; taps recombined with sublane shifts."""
    y = _dot(x, w_cat)                                     # [x@W0 | x@W1 | x@W2]
    return down(y[:, :Co]) + y[:, Co:2 * Co] + up(y[:, 2 * Co:]) + b


def _conv_same_paired(x_lo, x_hi, w_cat, b, Co, down, up):
    """Conv1d(k3,s1,p1) on the 2T grid, even/odd phase-paired (2 dots total).

    x_lo[t] = x[2t], x_hi[t] = x[2t+1].
    """
    lo = _dot(x_lo, w_cat)                                 # [x_lo@W0 | x_lo@W1 | x_lo@W2]
    hi = _dot(x_hi, w_cat)
    # y[2t]   = x[2t-1]@W0 + x[2t]@W1   + x[2t+1]@W2
    y_e = down(hi[:, :Co]) + lo[:, Co:2 * Co] + hi[:, 2 * Co:] + b
    # y[2t+1] = x[2t]@W0   + x[2t+1]@W1 + x[2t+2]@W2
    y_o = lo[:, :Co] + hi[:, Co:2 * Co] + up(lo[:, 2 * Co:]) + b
    return y_e, y_o


def _convt_up2_paired(xd, w_cat, b, Co, up):
    """ConvTranspose1d(k3,s2,p1,op1) directly from the compact input (1 dot total)."""
    y = _dot(xd, w_cat)                                    # [xd@Wd0 | xd@Wd1 | xd@Wd2]
    d_e = y[:, Co:2 * Co] + b                              # out[2t]   = x[t]@Wd1
    d_o = y[:, 2 * Co:] + up(y[:, :Co]) + b                # out[2t+1] = x[t]@Wd2 + x[t+1]@Wd0
    return d_e, d_o


def _fpn_layer_body(xe, xd, we, be, wd, bd, wf, bf, C, Co, down, up):
    """One VSGNFPN layer (enc-conv + dec-convT, ReLU, sum, fuse-conv, ReLU), paired."""
    cdt = xe.dtype
    e_e, e_o = _conv_same_paired(xe[:, :C], xe[:, C:], we, be, Co, down, up)
    d_e, d_o = _convt_up2_paired(xd, wd, bd, Co, up)
    s_e = (jnp.maximum(e_e, 0.0) + jnp.maximum(d_e, 0.0)).astype(cdt)
    s_o = (jnp.maximum(e_o, 0.0) + jnp.maximum(d_o, 0.0)).astype(cdt)
    f_e, f_o = _conv_same_paired(s_e, s_o, wf, bf, Co, down, up)
    return jnp.maximum(f_e, 0.0), jnp.maximum(f_o, 0.0)


def _store_paired(o_ref, v_e, v_o, Co, lane_aligned):
    if lane_aligned:
        # Direct lane-slice stores: no (T, 2Co) concat temporary (Co % 128 == 0 only).
        o_ref[0, :, 0:Co] = v_e.astype(o_ref.dtype)
        o_ref[0, :, Co:2 * Co] = v_o.astype(o_ref.dtype)
    else:
        o_ref[0] = jnp.concatenate([v_e, v_o], axis=-1).astype(o_ref.dtype)


# ----------------------------------------------------------------------------------
# Kernels
# ----------------------------------------------------------------------------------
def transit_kernel(x_ref, m_ref, w_ref, b_ref, o_ref, *, Co):
    """Standalone Conv1d(k3,s1,p1)+ReLU+mask (only used when num_levels == 1)."""
    T = x_ref.shape[1]
    down, up = _shift_helpers(T)
    y = jnp.maximum(_conv_same(x_ref[0], w_ref[...], b_ref[...], Co, down, up), 0.0)
    o_ref[0] = (y * m_ref[0]).astype(o_ref.dtype)


def transit_fpn_kernel(xe_ref, xc_ref, mc_ref, me_ref,
                       wt_ref, bt_ref, we_ref, be_ref, wd_ref, bd_ref, wf_ref, bf_ref,
                       *out_refs, C, Co, emit_feat, lane_aligned):
    """Fused transit conv (coarsest level) + first FPN layer, phase-paired layout.

    xe_ref: (1, T, 2C) paired encoder input (level length 2T)
    xc_ref: (1, T, C)  coarsest level input
    mc_ref: (1, T, 1)  coarsest mask; me_ref: (1, T, 2) paired mask
    outputs: masked coarsest (1,T,Co), [unmasked paired feat], masked paired (1,T,2Co)
    """
    T = xc_ref.shape[1]
    down, up = _shift_helpers(T)

    # Transit: Conv1d(k3,s1,p1)+ReLU on the coarsest level.
    y = jnp.maximum(_conv_same(xc_ref[0], wt_ref[...], bt_ref[...], Co, down, up), 0.0)

    if emit_feat:
        oc_ref, of_ref, om_ref = out_refs
    else:
        oc_ref, om_ref = out_refs
    oc_ref[0] = (y * mc_ref[0]).astype(oc_ref.dtype)

    # First FPN layer: decoder input is the (in-register) transit feature.
    xe = xe_ref[0]
    f_e, f_o = _fpn_layer_body(xe, y.astype(xe.dtype),
                               we_ref[...], be_ref[...], wd_ref[...], bd_ref[...],
                               wf_ref[...], bf_ref[...], C, Co, down, up)
    if emit_feat:
        _store_paired(of_ref, f_e, f_o, Co, lane_aligned)
    m = me_ref[0]
    _store_paired(om_ref, f_e * m[:, 0:1], f_o * m[:, 1:2], Co, lane_aligned)


def fpn_layer_kernel(xe_ref, xd_ref, m_ref, we_ref, be_ref, wd_ref, bd_ref,
                     wf_ref, bf_ref, *out_refs, C, Co, emit_feat, lane_aligned):
    """One fused VSGNFPN layer (non-first layers), phase-paired layout."""
    T = xd_ref.shape[1]
    down, up = _shift_helpers(T)
    xe = xe_ref[0]
    f_e, f_o = _fpn_layer_body(xe, xd_ref[0], we_ref[...], be_ref[...],
                               wd_ref[...], bd_ref[...], wf_ref[...], bf_ref[...],
                               C, Co, down, up)
    if emit_feat:
        of_ref, om_ref = out_refs
        _store_paired(of_ref, f_e, f_o, Co, lane_aligned)
    else:
        (om_ref,) = out_refs
    m = m_ref[0]
    _store_paired(om_ref, f_e * m[:, 0:1], f_o * m[:, 1:2], Co, lane_aligned)


# ----------------------------------------------------------------------------------
# pallas_call wrappers
# ----------------------------------------------------------------------------------
def _const_spec(shape):
    return pl.BlockSpec(shape, lambda b: (0,) * len(shape))


def _nbytes(shape, dtype):
    return math.prod(shape) * np.dtype(dtype).itemsize


def _compiler_params(block_bytes):
    """VMEM budget from actual per-step blocks (double-buffered) + headroom for the
    f32 intermediates, clamped to 48 MiB so we never request a whole v7x core's
    64 MiB VMEM (v5e/v6e have 128 MiB, so 48 MiB is safely under everywhere).
    Production-length T needs the halo-tiled T axis (TODO above) to stay in budget."""
    need = 2 * block_bytes + (16 << 20)
    return pltpu.CompilerParams(
        dimension_semantics=("parallel",),
        vmem_limit_bytes=int(min(max(need, 32 << 20), 48 << 20)))


def transit_level(x_tc, mask_f, p):
    """num_levels == 1 path.  x_tc: (B, T, C); mask_f: (B, T) f32."""
    B, T, C = x_tc.shape
    Co = p["b"].shape[1]
    m = mask_f.reshape(B, T, 1)
    blk = (_nbytes((1, T, C), x_tc.dtype) + _nbytes((1, T, 1), jnp.float32)
           + _nbytes(p["w"].shape, p["w"].dtype) + _nbytes(p["b"].shape, jnp.float32)
           + _nbytes((1, T, Co), x_tc.dtype))
    return pl.pallas_call(
        functools.partial(transit_kernel, Co=Co),
        out_shape=jax.ShapeDtypeStruct((B, T, Co), x_tc.dtype),
        grid=(B,),
        in_specs=[pl.BlockSpec((1, T, C), lambda b: (b, 0, 0)),
                  pl.BlockSpec((1, T, 1), lambda b: (b, 0, 0)),
                  _const_spec(p["w"].shape), _const_spec(p["b"].shape)],
        out_specs=pl.BlockSpec((1, T, Co), lambda b: (b, 0, 0)),
        compiler_params=_compiler_params(blk),
    )(x_tc, m, p["w"], p["b"])


def transit_fpn_level(x_enc_tc, x_coarse_tc, mask_enc_f, mask_coarse_f,
                      pt, pe, pd, pf, *, emit_feat):
    """Fused transit + first FPN layer.  x_enc_tc: (B, 2T, C); x_coarse_tc: (B, T, C)."""
    B, T2, C = x_enc_tc.shape
    Tc = x_coarse_tc.shape[1]
    assert T2 == 2 * Tc, "this implementation supports scale_factor == 2"
    Co = pt["b"].shape[1]
    lane_aligned = (Co % 128 == 0)
    dt = x_enc_tc.dtype

    xe_pair = x_enc_tc.reshape(B, Tc, 2 * C)       # free row-major pairing
    me_pair = mask_enc_f.reshape(B, Tc, 2)
    mc = mask_coarse_f.reshape(B, Tc, 1)

    out_shapes = [jax.ShapeDtypeStruct((B, Tc, Co), dt)]
    out_specs = [pl.BlockSpec((1, Tc, Co), lambda b: (b, 0, 0))]
    if emit_feat:
        out_shapes.append(jax.ShapeDtypeStruct((B, Tc, 2 * Co), dt))
        out_specs.append(pl.BlockSpec((1, Tc, 2 * Co), lambda b: (b, 0, 0)))
    out_shapes.append(jax.ShapeDtypeStruct((B, Tc, 2 * Co), dt))
    out_specs.append(pl.BlockSpec((1, Tc, 2 * Co), lambda b: (b, 0, 0)))

    weights = [pt["w"], pt["b"], pe["w"], pe["b"], pd["w"], pd["b"], pf["w"], pf["b"]]
    blk = (_nbytes((1, Tc, 2 * C), dt) + _nbytes((1, Tc, C), dt)
           + _nbytes((1, Tc, 1), jnp.float32) + _nbytes((1, Tc, 2), jnp.float32)
           + sum(_nbytes(w.shape, w.dtype) for w in weights)
           + sum(_nbytes(s.shape, s.dtype) for s in out_shapes))

    kernel = functools.partial(transit_fpn_kernel, C=C, Co=Co,
                               emit_feat=emit_feat, lane_aligned=lane_aligned)
    res = pl.pallas_call(
        kernel,
        out_shape=tuple(out_shapes),
        grid=(B,),
        in_specs=[pl.BlockSpec((1, Tc, 2 * C), lambda b: (b, 0, 0)),
                  pl.BlockSpec((1, Tc, C), lambda b: (b, 0, 0)),
                  pl.BlockSpec((1, Tc, 1), lambda b: (b, 0, 0)),
                  pl.BlockSpec((1, Tc, 2), lambda b: (b, 0, 0))]
                 + [_const_spec(w.shape) for w in weights],
        out_specs=tuple(out_specs),
        compiler_params=_compiler_params(blk),
    )(xe_pair, x_coarse_tc, mc, me_pair, *weights)

    if emit_feat:
        masked_c, feat_pair, masked_pair = res
        return masked_c, feat_pair.reshape(B, T2, Co), masked_pair.reshape(B, T2, Co)
    masked_c, masked_pair = res
    return masked_c, masked_pair.reshape(B, T2, Co)


def fpn_level(x_enc_tc, x_dec_tc, mask_f, pe, pd, pf, *, emit_feat):
    """x_enc_tc: (B, 2T, C); x_dec_tc: (B, T, C); mask_f: (B, 2T) f32."""
    B, T2, C = x_enc_tc.shape
    T = x_dec_tc.shape[1]
    assert T2 == 2 * T, "this implementation supports scale_factor == 2"
    Co = pe["b"].shape[1]
    lane_aligned = (Co % 128 == 0)
    dt = x_enc_tc.dtype

    xe_pair = x_enc_tc.reshape(B, T, 2 * C)
    m_pair = mask_f.reshape(B, T, 2)

    out_shapes, out_specs = [], []
    if emit_feat:
        out_shapes.append(jax.ShapeDtypeStruct((B, T, 2 * Co), dt))
        out_specs.append(pl.BlockSpec((1, T, 2 * Co), lambda b: (b, 0, 0)))
    out_shapes.append(jax.ShapeDtypeStruct((B, T, 2 * Co), dt))
    out_specs.append(pl.BlockSpec((1, T, 2 * Co), lambda b: (b, 0, 0)))

    weights = [pe["w"], pe["b"], pd["w"], pd["b"], pf["w"], pf["b"]]
    blk = (_nbytes((1, T, 2 * C), dt) + _nbytes((1, T, C), dt)
           + _nbytes((1, T, 2), jnp.float32)
           + sum(_nbytes(w.shape, w.dtype) for w in weights)
           + sum(_nbytes(s.shape, s.dtype) for s in out_shapes))

    kernel = functools.partial(fpn_layer_kernel, C=C, Co=Co,
                               emit_feat=emit_feat, lane_aligned=lane_aligned)
    res = pl.pallas_call(
        kernel,
        out_shape=tuple(out_shapes),
        grid=(B,),
        in_specs=[pl.BlockSpec((1, T, 2 * C), lambda b: (b, 0, 0)),
                  pl.BlockSpec((1, T, C), lambda b: (b, 0, 0)),
                  pl.BlockSpec((1, T, 2), lambda b: (b, 0, 0))]
                 + [_const_spec(w.shape) for w in weights],
        out_specs=tuple(out_specs),
        compiler_params=_compiler_params(blk),
    )(xe_pair, x_dec_tc, m_pair, *weights)

    if emit_feat:
        feat_pair, masked_pair = res
        return feat_pair.reshape(B, T2, Co), masked_pair.reshape(B, T2, Co)
    masked_pair = res[0] if isinstance(res, (tuple, list)) else res
    return masked_pair.reshape(B, T2, Co)


# ----------------------------------------------------------------------------------
# One-time parameter preprocessing + full forward (PyTorch semantics)
# ----------------------------------------------------------------------------------
def prepare_params(params, dtype=jnp.bfloat16, pad_to=None):
    """Hoisted weight prep: tap extraction, tap concatenation, lane padding, casts.

    Each conv weight becomes a single (Cin_p, 3*Cout_p) matrix [W0|W1|W2] so the conv
    is one MXU dot.  pad_to=128 lane-aligns channels (production path): result slices
    and output stores become unmasked, at the cost of zero-padded channels.
    """
    def _rnd(n):
        return n if pad_to is None else ((n + pad_to - 1) // pad_to) * pad_to

    def _prep(taps, bias):                      # taps: (3, Cin, Cout)
        _, Ci, Co = taps.shape
        taps = jnp.pad(taps, ((0, 0), (0, _rnd(Ci) - Ci), (0, _rnd(Co) - Co)))
        wcat = jnp.concatenate([taps[0], taps[1], taps[2]], axis=-1)
        b = jnp.pad(bias, (0, _rnd(Co) - Co)).reshape(1, -1)
        return {"w": wcat.astype(dtype), "b": b.astype(jnp.float32)}

    def conv_prep(p):        # Conv1d weight (Cout, Cin, 3)
        return _prep(jnp.transpose(p["w"], (2, 1, 0)), p["b"])

    def convt_prep(p):       # ConvTranspose1d weight (Cin, Cout, 3)
        return _prep(jnp.transpose(p["w"], (2, 0, 1)), p["b"])

    C_in = params["transit"]["w"].shape[1]
    return {"transit": conv_prep(params["transit"]),
            "enc": [conv_prep(p) for p in params["enc"]],
            "dec": [convt_prep(p) for p in params["dec"]],
            "fuse": [conv_prep(p) for p in params["fuse"]],
            "C_in": C_in, "C_pad": _rnd(C_in)}


def vsgn_fpn_forward_channels_last(prepped, feat_list_cl, mask_list, num_levels,
                                   compute_dtype=jnp.bfloat16):
    """Channels-last core path.  feat_list_cl[i]: (B, T_i, C), T_0 the longest.

    Returns ([masked (B, T_i, C) outputs], mask_list) matching the PyTorch module.
    """
    C, Cp = prepped["C_in"], prepped["C_pad"]
    xs = []
    for f in feat_list_cl:
        x = f.astype(compute_dtype)
        if Cp != C:
            x = jnp.pad(x, ((0, 0), (0, 0), (0, Cp - C)))
        xs.append(x)
    masks_f = [m.astype(jnp.float32) for m in mask_list]

    if num_levels == 1:
        outs = [transit_level(xs[-1], masks_f[-1], prepped["transit"])]
    else:
        # Fused transit + first FPN layer (the two coarsest levels), then the rest.
        emit0 = num_levels > 2
        res = transit_fpn_level(xs[num_levels - 2], xs[num_levels - 1],
                                masks_f[num_levels - 2], masks_f[num_levels - 1],
                                prepped["transit"], prepped["enc"][0],
                                prepped["dec"][0], prepped["fuse"][0],
                                emit_feat=emit0)
        if emit0:
            masked_c, feat, masked1 = res
        else:
            masked_c, masked1 = res
            feat = None
        outs = [masked_c, masked1]                         # coarsest -> finest
        for i in range(2, num_levels):
            lvl = num_levels - 1 - i                       # feat_list index of enc input
            is_top = i == num_levels - 1
            r = fpn_level(xs[lvl], feat, masks_f[lvl],
                          prepped["enc"][i - 1], prepped["dec"][i - 1],
                          prepped["fuse"][i - 1], emit_feat=not is_top)
            if is_top:
                outs.append(r)
            else:
                feat, masked_i = r
                outs.append(masked_i)
    outs = outs[::-1]
    if Cp != C:
        outs = [o[:, :, :C] for o in outs]
    return outs, mask_list


def vsgn_fpn_forward(prepped, feat_list, mask_list, num_levels,
                     compute_dtype=jnp.bfloat16):
    """PyTorch NCW adapter.  feat_list[i]: (B, C, T_i); returns (B, C, T_i) outputs.
    The transposes here are boundary glue only; keep the surrounding model
    channels-last and call vsgn_fpn_forward_channels_last to avoid them."""
    xs = [jnp.transpose(f, (0, 2, 1)) for f in feat_list]
    outs, masks = vsgn_fpn_forward_channels_last(prepped, xs, mask_list, num_levels,
                                                 compute_dtype)
    return [jnp.transpose(o, (0, 2, 1)) for o in outs], masks


# ----------------------------------------------------------------------------------
# Pure-JAX reference replicating the PyTorch module literally (for verification)
# ----------------------------------------------------------------------------------
def _ref_conv1d(x, w, b):                      # x: (B,Ci,T), w: (Co,Ci,3), b: (Co,)
    B, Ci, T = x.shape
    xp = jnp.pad(x, ((0, 0), (0, 0), (1, 1)))
    out = jnp.zeros((B, w.shape[0], T), jnp.float32)
    for k in range(3):
        out = out + jnp.einsum("bct,oc->bot", xp[:, :, k:k + T], w[:, :, k])
    return out + b[None, :, None]


def _ref_convt1d(x, w, b, stride=2, padding=1, output_padding=1):
    B, Ci, T = x.shape                         # w: (Ci,Co,3)
    Co = w.shape[1]
    full_len = (T - 1) * stride + 3
    full = jnp.zeros((B, Co, full_len), jnp.float32)
    for k in range(3):
        contrib = jnp.einsum("bct,co->bot", x, w[:, :, k])
        full = full.at[:, :, k:k + (T - 1) * stride + 1:stride].add(contrib)
    Tout = (T - 1) * stride - 2 * padding + 3 + output_padding
    pad_r = max(0, padding + Tout - full_len)
    full = jnp.pad(full, ((0, 0), (0, 0), (0, pad_r)))
    return full[:, :, padding:padding + Tout] + b[None, :, None]


def ref_forward(params, feat_list, mask_list, num_levels):
    relu = lambda v: jnp.maximum(v, 0.0)
    feats = [relu(_ref_conv1d(feat_list[-1], params["transit"]["w"], params["transit"]["b"]))]
    rev = feat_list[::-1]
    for i in range(1, num_levels):
        fe = relu(_ref_conv1d(rev[i], params["enc"][i - 1]["w"], params["enc"][i - 1]["b"]))
        fd = relu(_ref_convt1d(feats[i - 1], params["dec"][i - 1]["w"], params["dec"][i - 1]["b"]))
        feats.append(relu(_ref_conv1d(fe + fd, params["fuse"][i - 1]["w"], params["fuse"][i - 1]["b"])))
    feats = feats[::-1]
    return [feats[i] * mask_list[i][:, None, :].astype(jnp.float32) for i in range(num_levels)]


# ----------------------------------------------------------------------------------
if __name__ == "__main__":
    B, C, num_levels = 2, 8, 3          # in_channels == out_channels (required by module)
    Ts = [32, 16, 8]                    # level lengths, level 0 is the finest

    key = jax.random.PRNGKey(0)

    def init_conv(k, cin, cout):        # Conv1d params
        k1, k2 = jax.random.split(k)
        return {"w": jax.random.normal(k1, (cout, cin, 3), jnp.float32) * 0.1,
                "b": jax.random.normal(k2, (cout,), jnp.float32) * 0.1}

    def init_convt(k, cin, cout):       # ConvTranspose1d params
        k1, k2 = jax.random.split(k)
        return {"w": jax.random.normal(k1, (cin, cout, 3), jnp.float32) * 0.1,
                "b": jax.random.normal(k2, (cout,), jnp.float32) * 0.1}

    keys = jax.random.split(key, 1 + 3 * (num_levels - 1) + num_levels)
    ki = iter(keys)
    params = {
        "transit": init_conv(next(ki), C, C),
        "enc": [init_conv(next(ki), C, C) for _ in range(num_levels - 1)],
        "dec": [init_convt(next(ki), C, C) for _ in range(num_levels - 1)],
        "fuse": [init_conv(next(ki), C, C) for _ in range(num_levels - 1)],
    }

    feat_list = [jax.random.normal(next(ki), (B, C, T), jnp.float32) for T in Ts]
    mask_list = [jnp.arange(T)[None, :] < jnp.array([T, T - T // 4])[:, None] for T in Ts]

    refs = ref_forward(params, feat_list, mask_list, num_levels)

    # f32 verification run (no channel padding, concat-store path, tight tolerance).
    prepped_f32 = prepare_params(params, jnp.float32, pad_to=None)
    outs_f32, _ = vsgn_fpn_forward(prepped_f32, feat_list, mask_list, num_levels,
                                   compute_dtype=jnp.float32)
    outs_f32 = [jax.block_until_ready(o) for o in outs_f32]
    for lvl, (o, r) in enumerate(zip(outs_f32, refs)):
        assert o.shape == r.shape, (lvl, o.shape, r.shape)
        err = float(jnp.max(jnp.abs(o - r)))
        assert jnp.allclose(o, r, atol=1e-3, rtol=1e-3), \
            f"f32 level {lvl} mismatch, max err {err}"

    # bf16 production-mode run: 128-lane channel padding, lane-aligned slice stores,
    # f32 MXU accumulation.  Note: the enc+dec sum is rounded to bf16 before the fuse
    # conv (one extra rounding vs. the f32 reference) -> loose tolerance.
    prepped_bf16 = prepare_params(params, jnp.bfloat16, pad_to=128)
    outs_bf16, _ = vsgn_fpn_forward(prepped_bf16, feat_list, mask_list, num_levels,
                                    compute_dtype=jnp.bfloat16)
    outs_bf16 = [jax.block_until_ready(o) for o in outs_bf16]
    for lvl, (o, r) in enumerate(zip(outs_bf16, refs)):
        assert o.shape == r.shape, (lvl, o.shape, r.shape)
        err = float(jnp.max(jnp.abs(o.astype(jnp.float32) - r)))
        assert err < 0.12, f"bf16 level {lvl} mismatch, max err {err}"

    # num_levels == 1 path (standalone transit kernel), f32.
    params1 = {"transit": params["transit"], "enc": [], "dec": [], "fuse": []}
    prepped1 = prepare_params(params1, jnp.float32, pad_to=None)
    outs1, _ = vsgn_fpn_forward(prepped1, feat_list[-1:], mask_list[-1:], 1,
                                compute_dtype=jnp.float32)
    outs1 = [jax.block_until_ready(o) for o in outs1]
    ref1 = ref_forward(params1, feat_list[-1:], mask_list[-1:], 1)
    assert jnp.allclose(outs1[0], ref1[0], atol=1e-3, rtol=1e-3), "num_levels==1 mismatch"

    print("KERNEL_OK")
</pallas_src>

<mosaic_0001>
module attributes {stable_mosaic.version = 11 : i64} {
  func.func @transit_fpn_kernel(%arg0: i32, %arg1: memref<1x8x16xf32, #tpu.memory_space<vmem>>, %arg2: memref<1x8x8xf32, #tpu.memory_space<vmem>>, %arg3: memref<1x8x1xf32, #tpu.memory_space<vmem>>, %arg4: memref<1x8x2xf32, #tpu.memory_space<vmem>>, %arg5: memref<8x24xf32, #tpu.memory_space<vmem>>, %arg6: memref<1x8xf32, #tpu.memory_space<vmem>>, %arg7: memref<8x24xf32, #tpu.memory_space<vmem>>, %arg8: memref<1x8xf32, #tpu.memory_space<vmem>>, %arg9: memref<8x24xf32, #tpu.memory_space<vmem>>, %arg10: memref<1x8xf32, #tpu.memory_space<vmem>>, %arg11: memref<8x24xf32, #tpu.memory_space<vmem>>, %arg12: memref<1x8xf32, #tpu.memory_space<vmem>>, %arg13: memref<1x8x8xf32, #tpu.memory_space<vmem>>, %arg14: memref<1x8x16xf32, #tpu.memory_space<vmem>>, %arg15: memref<1x8x16xf32, #tpu.memory_space<vmem>>) attributes {dimension_semantics = [#tpu.dimension_semantics<parallel>], iteration_bounds = array<i64: 2>, scalar_prefetch = 0 : i64, scratch_operands = 0 : i64, tpu.core_type = #tpu.core_type<tc>, window_params = [{transform_indices = @transform_0, window_bounds = array<i64: 1, 8, 16>}, {transform_indices = @transform_1, window_bounds = array<i64: 1, 8, 8>}, {transform_indices = @transform_2, window_bounds = array<i64: 1, 8, 1>}, {transform_indices = @transform_3, window_bounds = array<i64: 1, 8, 2>}, {pipeline_mode = #tpu.pipeline_mode<synchronous>, transform_indices = @transform_4, window_bounds = array<i64: 8, 24>}, {pipeline_mode = #tpu.pipeline_mode<synchronous>, transform_indices = @transform_5, window_bounds = array<i64: 1, 8>}, {pipeline_mode = #tpu.pipeline_mode<synchronous>, transform_indices = @transform_6, window_bounds = array<i64: 8, 24>}, {pipeline_mode = #tpu.pipeline_mode<synchronous>, transform_indices = @transform_7, window_bounds = array<i64: 1, 8>}, {pipeline_mode = #tpu.pipeline_mode<synchronous>, transform_indices = @transform_8, window_bounds = array<i64: 8, 24>}, {pipeline_mode = #tpu.pipeline_mode<synchronous>, transform_indices = @transform_9, window_bounds = array<i64: 1, 8>}, {pipeline_mode = #tpu.pipeline_mode<synchronous>, transform_indices = @transform_10, window_bounds = array<i64: 8, 24>}, {pipeline_mode = #tpu.pipeline_mode<synchronous>, transform_indices = @transform_11, window_bounds = array<i64: 1, 8>}, {transform_indices = @transform_12, window_bounds = array<i64: 1, 8, 8>}, {transform_indices = @transform_13, window_bounds = array<i64: 1, 8, 16>}, {transform_indices = @transform_14, window_bounds = array<i64: 1, 8, 16>}]} {
    %0 = tpu.iota {dimensions = array<i32: 0>} : vector<8x1xi32>
    %c0 = arith.constant 0 : index
    %c0_0 = arith.constant 0 : index
    %c0_1 = arith.constant 0 : index
    %1 = vector.load %arg2[%c0, %c0_0, %c0_1] : memref<1x8x8xf32, #tpu.memory_space<vmem>>, vector<1x8x8xf32>
    %2 = vector.shape_cast %1 : vector<1x8x8xf32> to vector<8x8xf32>
    %c0_2 = arith.constant 0 : index
    %c0_3 = arith.constant 0 : index
    %3 = vector.load %arg5[%c0_2, %c0_3] : memref<8x24xf32, #tpu.memory_space<vmem>>, vector<8x24xf32>
    %c0_4 = arith.constant 0 : index
    %c0_5 = arith.constant 0 : index
    %4 = vector.load %arg6[%c0_4, %c0_5] : memref<1x8xf32, #tpu.memory_space<vmem>>, vector<1x8xf32>
    %cst = arith.constant dense<0.000000e+00> : vector<8x24xf32>
    %5 = tpu.matmul %2, %3, %cst {dimension_numbers = #tpu.dot_dimension_numbers<[1], [0], [0], [1], [0, 0, 1, 1], [], []>} : vector<8x8xf32>, vector<8x24xf32>, vector<8x24xf32> -> vector<8x24xf32>
    %6 = vector.extract_strided_slice %5 {offsets = [0, 0], sizes = [8, 8], strides = [1, 1]} : vector<8x24xf32> to vector<8x8xf32>
    %c0_i32 = arith.constant 0 : i32
    %7 = vector.broadcast %c0_i32 : i32 to vector<8x1xi32>
    %8 = arith.cmpi sgt, %0, %7 : vector<8x1xi32>
    %c1_i32 = arith.constant 1 : i32
    %9 = tpu.dynamic_rotate %6 by %c1_i32 dim 0 : vector<8x8xf32>, i32 -> vector<8x8xf32>
    %cst_6 = arith.constant 0.000000e+00 : f32
    %10 = vector.shape_cast %8 : vector<8x1xi1> to vector<8x1xi1>
    %11 = vector.broadcast %10 : vector<8x1xi1> to vector<8x8xi1>
    %12 = vector.broadcast %cst_6 : f32 to vector<8x8xf32>
    %13 = arith.select %11, %9, %12 : vector<8x8xi1>, vector<8x8xf32>
    %14 = vector.extract_strided_slice %5 {offsets = [0, 8], sizes = [8, 8], strides = [1, 1]} : vector<8x24xf32> to vector<8x8xf32>
    %15 = arith.addf %13, %14 : vector<8x8xf32>
    %16 = vector.extract_strided_slice %5 {offsets = [0, 16], sizes = [8, 8], strides = [1, 1]} : vector<8x24xf32> to vector<8x8xf32>
    %c7_i32 = arith.constant 7 : i32
    %17 = vector.broadcast %c7_i32 : i32 to vector<8x1xi32>
    %18 = arith.cmpi slt, %0, %17 : vector<8x1xi32>
    %c7_i32_7 = arith.constant 7 : i32
    %19 = tpu.dynamic_rotate %16 by %c7_i32_7 dim 0 : vector<8x8xf32>, i32 -> vector<8x8xf32>
    %cst_8 = arith.constant 0.000000e+00 : f32
    %20 = vector.shape_cast %18 : vector<8x1xi1> to vector<8x1xi1>
    %21 = vector.broadcast %20 : vector<8x1xi1> to vector<8x8xi1>
    %22 = vector.broadcast %cst_8 : f32 to vector<8x8xf32>
    %23 = arith.select %21, %19, %22 : vector<8x8xi1>, vector<8x8xf32>
    %24 = arith.addf %15, %23 : vector<8x8xf32>
    %25 = vector.broadcast %4 : vector<1x8xf32> to vector<8x8xf32>
    %26 = arith.addf %24, %25 : vector<8x8xf32>
    %cst_9 = arith.constant 0.000000e+00 : f32
    %27 = vector.broadcast %cst_9 : f32 to vector<8x8xf32>
    %28 = arith.maximumf %26, %27 : vector<8x8xf32>
    %c0_10 = arith.constant 0 : index
    %c0_11 = arith.constant 0 : index
    %c0_12 = arith.constant 0 : index
    %29 = vector.load %arg3[%c0_10, %c0_11, %c0_12] : memref<1x8x1xf32, #tpu.memory_space<vmem>>, vector<1x8x1xf32>
    %30 = vector.shape_cast %29 : vector<1x8x1xf32> to vector<8x1xf32>
    %31 = vector.broadcast %30 : vector<8x1xf32> to vector<8x8xf32>
    %32 = arith.mulf %28, %31 : vector<8x8xf32>
    %c0_13 = arith.constant 0 : index
    %c0_14 = arith.constant 0 : index
    %c0_15 = arith.constant 0 : index
    %33 = vector.load %arg13[%c0_13, %c0_14, %c0_15] : memref<1x8x8xf32, #tpu.memory_space<vmem>>, vector<1x8x8xf32>
    %34 = vector.shape_cast %33 : vector<1x8x8xf32> to vector<8x8xf32>
    %35 = vector.shape_cast %32 : vector<8x8xf32> to vector<1x8x8xf32>
    tpu.vector_store %arg13[%c0_13, %c0_14, %c0_15], %35 {strides = array<i32>} : memref<1x8x8xf32, #tpu.memory_space<vmem>>, vector<1x8x8xf32>,
    %c0_16 = arith.constant 0 : index
    %c0_17 = arith.constant 0 : index
    %c0_18 = arith.constant 0 : index
    %36 = vector.load %arg1[%c0_16, %c0_17, %c0_18] : memref<1x8x16xf32, #tpu.memory_space<vmem>>, vector<1x8x16xf32>
    %37 = vector.shape_cast %36 : vector<1x8x16xf32> to vector<8x16xf32>
    %c0_19 = arith.constant 0 : index
    %c0_20 = arith.constant 0 : index
    %38 = vector.load %arg7[%c0_19, %c0_20] : memref<8x24xf32, #tpu.memory_space<vmem>>, vector<8x24xf32>
    %c0_21 = arith.constant 0 : index
    %c0_22 = arith.constant 0 : index
    %39 = vector.load %arg8[%c0_21, %c0_22] : memref<1x8xf32, #tpu.memory_space<vmem>>, vector<1x8xf32>
    %c0_23 = arith.constant 0 : index
    %c0_24 = arith.constant 0 : index
    %40 = vector.load %arg9[%c0_23, %c0_24] : memref<8x24xf32, #tpu.memory_space<vmem>>, vector<8x24xf32>
    %c0_25 = arith.constant 0 : index
    %c0_26 = arith.constant 0 : index
    %41 = vector.load %arg10[%c0_25, %c0_26] : memref<1x8xf32, #tpu.memory_space<vmem>>, vector<1x8xf32>
    %c0_27 = arith.constant 0 : index
    %c0_28 = arith.constant 0 : index
    %42 = vector.load %arg11[%c0_27, %c0_28] : memref<8x24xf32, #tpu.memory_space<vmem>>, vector<8x24xf32>
    %c0_29 = arith.constant 0 : index
    %c0_30 = arith.constant 0 : index
    %43 = vector.load %arg12[%c0_29, %c0_30] : memref<1x8xf32, #tpu.memory_space<vmem>>, vector<1x8xf32>
    %44 = vector.extract_strided_slice %37 {offsets = [0, 0], sizes = [8, 8], strides = [1, 1]} : vector<8x16xf32> to vector<8x8xf32>
    %45 = vector.extract_strided_slice %37 {offsets = [0, 8], sizes = [8, 8], strides = [1, 1]} : vector<8x16xf32> to vector<8x8xf32>
    %cst_31 = arith.constant dense<0.000000e+00> : vector<8x24xf32>
    %46 = tpu.matmul %44, %38, %cst_31 {dimension_numbers = #tpu.dot_dimension_numbers<[1], [0], [0], [1], [0, 0, 1, 1], [], []>} : vector<8x8xf32>, vector<8x24xf32>, vector<8x24xf32> -> vector<8x24xf32>
    %cst_32 = arith.constant dense<0.000000e+00> : vector<8x24xf32>
    %47 = tpu.matmul %45, %38, %cst_32 {dimension_numbers = #tpu.dot_dimension_numbers<[1], [0], [0], [1], [0, 0, 1, 1], [], []>} : vector<8x8xf32>, vector<8x24xf32>, vector<8x24xf32> -> vector<8x24xf32>
    %48 = vector.extract_strided_slice %47 {offsets = [0, 0], sizes = [8, 8], strides = [1, 1]} : vector<8x24xf32> to vector<8x8xf32>
    %c0_i32_33 = arith.constant 0 : i32
    %49 = vector.broadcast %c0_i32_33 : i32 to vector<8x1xi32>
    %50 = arith.cmpi sgt, %0, %49 : vector<8x1xi32>
    %c1_i32_34 = arith.constant 1 : i32
    %51 = tpu.dynamic_rotate %48 by %c1_i32_34 dim 0 : vector<8x8xf32>, i32 -> vector<8x8xf32>
    %cst_35 = arith.constant 0.000000e+00 : f32
    %52 = vector.shape_cast %50 : vector<8x1xi1> to vector<8x1xi1>
    %53 = vector.broadcast %52 : vector<8x1xi1> to vector<8x8xi1>
    %54 = vector.broadcast %cst_35 : f32 to vector<8x8xf32>
    %55 = arith.select %53, %51, %54 : vector<8x8xi1>, vector<8x8xf32>
    %56 = vector.extract_strided_slice %46 {offsets = [0, 8], sizes = [8, 8], strides = [1, 1]} : vector<8x24xf32> to vector<8x8xf32>
    %57 = arith.addf %55, %56 : vector<8x8xf32>
    %58 = vector.extract_strided_slice %47 {offsets = [0, 16], sizes = [8, 8], strides = [1, 1]} : vector<8x24xf32> to vector<8x8xf32>
    %59 = arith.addf %57, %58 : vector<8x8xf32>
    %60 = vector.broadcast %39 : vector<1x8xf32> to vector<8x8xf32>
    %61 = arith.addf %59, %60 : vector<8x8xf32>
    %62 = vector.extract_strided_slice %46 {offsets = [0, 0], sizes = [8, 8], strides = [1, 1]} : vector<8x24xf32> to vector<8x8xf32>
    %63 = vector.extract_strided_slice %47 {offsets = [0, 8], sizes = [8, 8], strides = [1, 1]} : vector<8x24xf32> to vector<8x8xf32>
    %64 = arith.addf %62, %63 : vector<8x8xf32>
    %65 = vector.extract_strided_slice %46 {offsets = [0, 16], sizes = [8, 8], strides = [1, 1]} : vector<8x24xf32> to vector<8x8xf32>
    %c7_i32_36 = arith.constant 7 : i32
    %66 = vector.broadcast %c7_i32_36 : i32 to vector<8x1xi32>
    %67 = arith.cmpi slt, %0, %66 : vector<8x1xi32>
    %c7_i32_37 = arith.constant 7 : i32
    %68 = tpu.dynamic_rotate %65 by %c7_i32_37 dim 0 : vector<8x8xf32>, i32 -> vector<8x8xf32>
    %cst_38 = arith.constant 0.000000e+00 : f32
    %69 = vector.shape_cast %67 : vector<8x1xi1> to vector<8x1xi1>
    %70 = vector.broadcast %69 : vector<8x1xi1> to vector<8x8xi1>
    %71 = vector.broadcast %cst_38 : f32 to vector<8x8xf32>
    %72 = arith.select %70, %68, %71 : vector<8x8xi1>, vector<8x8xf32>
    %73 = arith.addf %64, %72 : vector<8x8xf32>
    %74 = vector.broadcast %39 : vector<1x8xf32> to vector<8x8xf32>
    %75 = arith.addf %73, %74 : vector<8x8xf32>
    %cst_39 = arith.constant dense<0.000000e+00> : vector<8x24xf32>
    %76 = tpu.matmul %28, %40, %cst_39 {dimension_numbers = #tpu.dot_dimension_numbers<[1], [0], [0], [1], [0, 0, 1, 1], [], []>} : vector<8x8xf32>, vector<8x24xf32>, vector<8x24xf32> -> vector<8x24xf32>
    %77 = vector.extract_strided_slice %76 {offsets = [0, 8], sizes = [8, 8], strides = [1, 1]} : vector<8x24xf32> to vector<8x8xf32>
    %78 = vector.broadcast %41 : vector<1x8xf32> to vector<8x8xf32>
    %79 = arith.addf %77, %78 : vector<8x8xf32>
    %80 = vector.extract_strided_slice %76 {offsets = [0, 16], sizes = [8, 8], strides = [1, 1]} : vector<8x24xf32> to vector<8x8xf32>
    %81 = vector.extract_strided_slice %76 {offsets = [0, 0], sizes = [8, 8], strides = [1, 1]} : vector<8x24xf32> to vector<8x8xf32>
    %c7_i32_40 = arith.constant 7 : i32
    %82 = vector.broadcast %c7_i32_40 : i32 to vector<8x1xi32>
    %83 = arith.cmpi slt, %0, %82 : vector<8x1xi32>
    %c7_i32_41 = arith.constant 7 : i32
    %84 = tpu.dynamic_rotate %81 by %c7_i32_41 dim 0 : vector<8x8xf32>, i32 -> vector<8x8xf32>
    %cst_42 = arith.constant 0.000000e+00 : f32
    %85 = vector.shape_cast %83 : vector<8x1xi1> to vector<8x1xi1>
    %86 = vector.broadcast %85 : vector<8x1xi1> to vector<8x8xi1>
    %87 = vector.broadcast %cst_42 : f32 to vector<8x8xf32>
    %88 = arith.select %86, %84, %87 : vector<8x8xi1>, vector<8x8xf32>
    %89 = arith.addf %80, %88 : vector<8x8xf32>
    %90 = vector.broadcast %41 : vector<1x8xf32> to vector<8x8xf32>
    %91 = arith.addf %89, %90 : vector<8x8xf32>
    %cst_43 = arith.constant 0.000000e+00 : f32
    %92 = vector.broadcast %cst_43 : f32 to vector<8x8xf32>
    %93 = arith.maximumf %61, %92 : vector<8x8xf32>
    %cst_44 = arith.constant 0.000000e+00 : f32
    %94 = vector.broadcast %cst_44 : f32 to vector<8x8xf32>
    %95 = arith.maximumf %79, %94 : vector<8x8xf32>
    %96 = arith.addf %93, %95 : vector<8x8xf32>
    %cst_45 = arith.constant 0.000000e+00 : f32
    %97 = vector.broadcast %cst_45 : f32 to vector<8x8xf32>
    %98 = arith.maximumf %75, %97 : vector<8x8xf32>
    %cst_46 = arith.constant 0.000000e+00 : f32
    %99 = vector.broadcast %cst_46 : f32 to vector<8x8xf32>
    %100 = arith.maximumf %91, %99 : vector<8x8xf32>
    %101 = arith.addf %98, %100 : vector<8x8xf32>
    %cst_47 = arith.constant dense<0.000000e+00> : vector<8x24xf32>
    %102 = tpu.matmul %96, %42, %cst_47 {dimension_numbers = #tpu.dot_dimension_numbers<[1], [0], [0], [1], [0, 0, 1, 1], [], []>} : vector<8x8xf32>, vector<8x24xf32>, vector<8x24xf32> -> vector<8x24xf32>
    %cst_48 = arith.constant dense<0.000000e+00> : vector<8x24xf32>
    %103 = tpu.matmul %101, %42, %cst_48 {dimension_numbers = #tpu.dot_dimension_numbers<[1], [0], [0], [1], [0, 0, 1, 1], [], []>} : vector<8x8xf32>, vector<8x24xf32>, vector<8x24xf32> -> vector<8x24xf32>
    %104 = vector.extract_strided_slice %103 {offsets = [0, 0], sizes = [8, 8], strides = [1, 1]} : vector<8x24xf32> to vector<8x8xf32>
    %c0_i32_49 = arith.constant 0 : i32
    %105 = vector.broadcast %c0_i32_49 : i32 to vector<8x1xi32>
    %106 = arith.cmpi sgt, %0, %105 : vector<8x1xi32>
    %c1_i32_50 = arith.constant 1 : i32
    %107 = tpu.dynamic_rotate %104 by %c1_i32_50 dim 0 : vector<8x8xf32>, i32 -> vector<8x8xf32>
    %cst_51 = arith.constant 0.000000e+00 : f32
    %108 = vector.shape_cast %106 : vector<8x1xi1> to vector<8x1xi1>
    %109 = vector.broadcast %108 : vector<8x1xi1> to vector<8x8xi1>
    %110 = vector.broadcast %cst_51 : f32 to vector<8x8xf32>
    %111 = arith.select %109, %107, %110 : vector<8x8xi1>, vector<8x8xf32>
    %112 = vector.extract_strided_slice %102 {offsets = [0, 8], sizes = [8, 8], strides = [1, 1]} : vector<8x24xf32> to vector<8x8xf32>
    %113 = arith.addf %111, %112 : vector<8x8xf32>
    %114 = vector.extract_strided_slice %103 {offsets = [0, 16], sizes = [8, 8], strides = [1, 1]} : vector<8x24xf32> to vector<8x8xf32>
    %115 = arith.addf %113, %114 : vector<8x8xf32>
    %116 = vector.broadcast %43 : vector<1x8xf32> to vector<8x8xf32>
    %117 = arith.addf %115, %116 : vector<8x8xf32>
    %118 = vector.extract_strided_slice %102 {offsets = [0, 0], sizes = [8, 8], strides = [1, 1]} : vector<8x24xf32> to vector<8x8xf32>
    %119 = vector.extract_strided_slice %103 {offsets = [0, 8], sizes = [8, 8], strides = [1, 1]} : vector<8x24xf32> to vector<8x8xf32>
    %120 = arith.addf %118, %119 : vector<8x8xf32>
    %121 = vector.extract_strided_slice %102 {offsets = [0, 16], sizes = [8, 8], strides = [1, 1]} : vector<8x24xf32> to vector<8x8xf32>
    %c7_i32_52 = arith.constant 7 : i32
    %122 = vector.broadcast %c7_i32_52 : i32 to vector<8x1xi32>
    %123 = arith.cmpi slt, %0, %122 : vector<8x1xi32>
    %c7_i32_53 = arith.constant 7 : i32
    %124 = tpu.dynamic_rotate %121 by %c7_i32_53 dim 0 : vector<8x8xf32>, i32 -> vector<8x8xf32>
    %cst_54 = arith.constant 0.000000e+00 : f32
    %125 = vector.shape_cast %123 : vector<8x1xi1> to vector<8x1xi1>
    %126 = vector.broadcast %125 : vector<8x1xi1> to vector<8x8xi1>
    %127 = vector.broadcast %cst_54 : f32 to vector<8x8xf32>
    %128 = arith.select %126, %124, %127 : vector<8x8xi1>, vector<8x8xf32>
    %129 = arith.addf %120, %128 : vector<8x8xf32>
    %130 = vector.broadcast %43 : vector<1x8xf32> to vector<8x8xf32>
    %131 = arith.addf %129, %130 : vector<8x8xf32>
    %cst_55 = arith.constant 0.000000e+00 : f32
    %132 = vector.broadcast %cst_55 : f32 to vector<8x8xf32>
    %133 = arith.maximumf %117, %132 : vector<8x8xf32>
    %cst_56 = arith.constant 0.000000e+00 : f32
    %134 = vector.broadcast %cst_56 : f32 to vector<8x8xf32>
    %135 = arith.maximumf %131, %134 : vector<8x8xf32>
    %136 = tpu.concatenate %133, %135 in 1 : vector<8x8xf32>, vector<8x8xf32> -> vector<8x16xf32>
    %c0_57 = arith.constant 0 : index
    %c0_58 = arith.constant 0 : index
    %c0_59 = arith.constant 0 : index
    %137 = vector.load %arg14[%c0_57, %c0_58, %c0_59] : memref<1x8x16xf32, #tpu.memory_space<vmem>>, vector<1x8x16xf32>
    %138 = vector.shape_cast %137 : vector<1x8x16xf32> to vector<8x16xf32>
    %139 = vector.shape_cast %136 : vector<8x16xf32> to vector<1x8x16xf32>
    tpu.vector_store %arg14[%c0_57, %c0_58, %c0_59], %139 {strides = array<i32>} : memref<1x8x16xf32, #tpu.memory_space<vmem>>, vector<1x8x16xf32>,
    %c0_60 = arith.constant 0 : index
    %c0_61 = arith.constant 0 : index
    %c0_62 = arith.constant 0 : index
    %140 = vector.load %arg4[%c0_60, %c0_61, %c0_62] : memref<1x8x2xf32, #tpu.memory_space<vmem>>, vector<1x8x2xf32>
    %141 = vector.shape_cast %140 : vector<1x8x2xf32> to vector<8x2xf32>
    %142 = vector.extract_strided_slice %141 {offsets = [0, 0], sizes = [8, 1], strides = [1, 1]} : vector<8x2xf32> to vector<8x1xf32>
    %143 = vector.broadcast %142 : vector<8x1xf32> to vector<8x8xf32>
    %144 = arith.mulf %133, %143 : vector<8x8xf32>
    %145 = vector.extract_strided_slice %141 {offsets = [0, 1], sizes = [8, 1], strides = [1, 1]} : vector<8x2xf32> to vector<8x1xf32>
    %146 = vector.broadcast %145 : vector<8x1xf32> to vector<8x8xf32>
    %147 = arith.mulf %135, %146 : vector<8x8xf32>
    %148 = tpu.concatenate %144, %147 in 1 : vector<8x8xf32>, vector<8x8xf32> -> vector<8x16xf32>
    %c0_63 = arith.constant 0 : index
    %c0_64 = arith.constant 0 : index
    %c0_65 = arith.constant 0 : index
    %149 = vector.load %arg15[%c0_63, %c0_64, %c0_65] : memref<1x8x16xf32, #tpu.memory_space<vmem>>, vector<1x8x16xf32>
    %150 = vector.shape_cast %149 : vector<1x8x16xf32> to vector<8x16xf32>
    %151 = vector.shape_cast %148 : vector<8x16xf32> to vector<1x8x16xf32>
    tpu.vector_store %arg15[%c0_63, %c0_64, %c0_65], %151 {strides = array<i32>} : memref<1x8x16xf32, #tpu.memory_space<vmem>>, vector<1x8x16xf32>,
    return
  }
  func.func @transform_0(%arg0: i32) -> (i32, i32, i32) {
    %c0_i32 = arith.constant 0 : i32
    %c0_i32_0 = arith.constant 0 : i32
    %c0_i32_1 = arith.constant 0 : i32
    return %arg0, %c0_i32, %c0_i32_0 : i32, i32, i32
  }
  func.func @transform_1(%arg0: i32) -> (i32, i32, i32) {
    %c0_i32 = arith.constant 0 : i32
    %c0_i32_0 = arith.constant 0 : i32
    %c0_i32_1 = arith.constant 0 : i32
    return %arg0, %c0_i32, %c0_i32_0 : i32, i32, i32
  }
  func.func @transform_2(%arg0: i32) -> (i32, i32, i32) {
    %c0_i32 = arith.constant 0 : i32
    %c0_i32_0 = arith.constant 0 : i32
    %c0_i32_1 = arith.constant 0 : i32
    return %arg0, %c0_i32, %c0_i32_0 : i32, i32, i32
  }
  func.func @transform_3(%arg0: i32) -> (i32, i32, i32) {
    %c0_i32 = arith.constant 0 : i32
    %c0_i32_0 = arith.constant 0 : i32
    %c0_i32_1 = arith.constant 0 : i32
    return %arg0, %c0_i32, %c0_i32_0 : i32, i32, i32
  }
  func.func @transform_4(%arg0: i32) -> (i32, i32) {
    %c0_i32 = arith.constant 0 : i32
    %c0_i32_0 = arith.constant 0 : i32
    %c0_i32_1 = arith.constant 0 : i32
    return %c0_i32, %c0_i32_0 : i32, i32
  }
  func.func @transform_5(%arg0: i32) -> (i32, i32) {
    %c0_i32 = arith.constant 0 : i32
    %c0_i32_0 = arith.constant 0 : i32
    %c0_i32_1 = arith.constant 0 : i32
    return %c0_i32, %c0_i32_0 : i32, i32
  }
  func.func @transform_6(%arg0: i32) -> (i32, i32) {
    %c0_i32 = arith.constant 0 : i32
    %c0_i32_0 = arith.constant 0 : i32
    %c0_i32_1 = arith.constant 0 : i32
    return %c0_i32, %c0_i32_0 : i32, i32
  }
  func.func @transform_7(%arg0: i32) -> (i32, i32) {
    %c0_i32 = arith.constant 0 : i32
    %c0_i32_0 = arith.constant 0 : i32
    %c0_i32_1 = arith.constant 0 : i32
    return %c0_i32, %c0_i32_0 : i32, i32
  }
  func.func @transform_8(%arg0: i32) -> (i32, i32) {
    %c0_i32 = arith.constant 0 : i32
    %c0_i32_0 = arith.constant 0 : i32
    %c0_i32_1 = arith.constant 0 : i32
    return %c0_i32, %c0_i32_0 : i32, i32
  }
  func.func @transform_9(%arg0: i32) -> (i32, i32) {
    %c0_i32 = arith.constant 0 : i32
    %c0_i32_0 = arith.constant 0 : i32
    %c0_i32_1 = arith.constant 0 : i32
    return %c0_i32, %c0_i32_0 : i32, i32
  }
  func.func @transform_10(%arg0: i32) -> (i32, i32) {
    %c0_i32 = arith.constant 0 : i32
    %c0_i32_0 = arith.constant 0 : i32
    %c0_i32_1 = arith.constant 0 : i32
    return %c0_i32, %c0_i32_0 : i32, i32
  }
  func.func @transform_11(%arg0: i32) -> (i32, i32) {
    %c0_i32 = arith.constant 0 : i32
    %c0_i32_0 = arith.constant 0 : i32
    %c0_i32_1 = arith.constant 0 : i32
    return %c0_i32, %c0_i32_0 : i32, i32
  }
  func.func @transform_12(%arg0: i32) -> (i32, i32, i32) {
    %c0_i32 = arith.constant 0 : i32
    %c0_i32_0 = arith.constant 0 : i32
    %c0_i32_1 = arith.constant 0 : i32
    return %arg0, %c0_i32, %c0_i32_0 : i32, i32, i32
  }
  func.func @transform_13(%arg0: i32) -> (i32, i32, i32) {
    %c0_i32 = arith.constant 0 : i32
    %c0_i32_0 = arith.constant 0 : i32
    %c0_i32_1 = arith.constant 0 : i32
    return %arg0, %c0_i32, %c0_i32_0 : i32, i32, i32
  }
  func.func @transform_14(%arg0: i32) -> (i32, i32, i32) {
    %c0_i32 = arith.constant 0 : i32
    %c0_i32_0 = arith.constant 0 : i32
    %c0_i32_1 = arith.constant 0 : i32
    return %arg0, %c0_i32, %c0_i32_0 : i32, i32, i32
  }
}

</mosaic_0001>

<llo_original>
// kernel: tpu_custom_call.1
$region0: #{tpu_custom_call.1}
  #allocation0 [shape = 'u32[]', space=smem, size = 0x4, offset = 0x4, fixed_abs, tag = 'smem constant byte address 0x4 - core index']
  #allocation1 [shape = 'u32[72,128]{1,0:T(1,128)}', space=vmem, size = 0x9000, scoped, tag = 'internal scratch']
  %s0 = inlined_call_operand.vmem [shape: f32[2,8,16], index: 0, kind: input, shape index: {}]
  %s1 = inlined_call_operand.vmem [shape: f32[2,8,8], index: 1, kind: input, shape index: {}]
  %s2 = inlined_call_operand.vmem [shape: f32[2,8,1], index: 2, kind: input, shape index: {}]
  %s3 = inlined_call_operand.vmem [shape: f32[2,8,2], index: 3, kind: input, shape index: {}]
  %s4 = inlined_call_operand.hbm [shape: f32[8,24], index: 4, kind: input, shape index: {}]
  %s5 = inlined_call_operand.hbm [shape: f32[1,8], index: 5, kind: input, shape index: {}]
  %s6 = inlined_call_operand.hbm [shape: f32[8,24], index: 6, kind: input, shape index: {}]
  %s7 = inlined_call_operand.hbm [shape: f32[1,8], index: 7, kind: input, shape index: {}]
  %s8 = inlined_call_operand.vmem [shape: f32[8,24], index: 8, kind: input, shape index: {}]
  %s9 = inlined_call_operand.vmem [shape: f32[1,8], index: 9, kind: input, shape index: {}]
  %s10 = inlined_call_operand.hbm [shape: f32[8,24], index: 10, kind: input, shape index: {}]
  %s11 = inlined_call_operand.vmem [shape: f32[1,8], index: 11, kind: input, shape index: {}]
  %s12 = inlined_call_operand.hbm [shape: f32[2,8,8], index: 12, kind: output, shape index: {0}]
  %s13 = inlined_call_operand.hbm [shape: f32[2,8,16], index: 13, kind: output, shape index: {1}]
  %s14 = inlined_call_operand.hbm [shape: f32[2,8,16], index: 14, kind: output, shape index: {2}]
  %15 = xla_tuple %s12, %s13, %s14
  %s16 = sld [smem:[#allocation0]]
  $region117: #{tpu_custom_call.1} parent=0
    _
  %s18 = ssub.s32 1, %s16
  %s19 = scalar_select 0, %s18, %s16
  $region1: #{tpu_custom_call.1} parent=0
    #allocation2 [shape = 'u8[4096]{0}', space=vmem, size = 0x1000, scoped, tag = 'input window, operand 4, single buffered']
    #allocation3 [shape = 's32[2]{0}', space=sflag, size = 0x8, scoped, tag = 'scoped memory for tpu_custom_call.1']
    #allocation4 [shape = 's32[2]{0}', space=sflag, size = 0x8, scoped, tag = 'scoped memory for tpu_custom_call.1']
    #allocation5 [shape = 'u8[512]{0}', space=vmem, size = 0x400, scoped, tag = 'input window, operand 5, single buffered']
    #allocation6 [shape = 's32[1]{0}', space=sflag, size = 0x4, scoped, tag = 'scoped memory for tpu_custom_call.1']
    #allocation7 [shape = 'u8[4096]{0}', space=vmem, size = 0x1000, scoped, tag = 'input window, operand 6, single buffered']
    #allocation8 [shape = 'u8[512]{0}', space=vmem, size = 0x400, scoped, tag = 'input window, operand 7, single buffered']
    #allocation9 [shape = 's32[1]{0}', space=sflag, size = 0x4, scoped, tag = 'scoped memory for tpu_custom_call.1']
    #allocation10 [shape = 'u8[4096]{0}', space=vmem, size = 0x1000, scoped, tag = 'input window, operand 10, single buffered']
    #allocation11 [shape = 'u8[8192]{0}', space=vmem, size = 0x2000, scoped, tag = 'output window, operand 0']
    #allocation12 [shape = 'u8[8192]{0}', space=vmem, size = 0x2000, scoped, tag = 'output window, operand 1']
    #allocation13 [shape = 's32[2]{0}', space=sflag, size = 0x8, scoped, tag = 'scoped memory for tpu_custom_call.1']
    #allocation14 [shape = 'u8[8192]{0}', space=vmem, size = 0x2000, scoped, tag = 'output window, operand 2']
    %20 = vsyncpa [#allocation3], 0
    %21 = vsyncpa [#allocation6], 0
    %22 = vsyncpa [#allocation9], 0
    %23 = vsyncpa [#allocation4], 0
    %s24 = scalar_lea.sflag [#allocation4], 1
    %25 = vsyncpa %s24, 0
    %26 = vsyncpa [#allocation13], 0
    %s27 = scalar_lea.sflag [#allocation13], 1
    %28 = vsyncpa %s27, 0
    loop: start=0, step=1, limit=4
    $region2: #{tpu_custom_call.1} parent=1 // loop_pre_header
      _
    $region3: #{tpu_custom_call.1} parent=1 // loop_header
      %s30 = sphi 0, %s34
      %p31 = scmp.ge.s32.totalorder %s30, 4
      %s40 = sphi 0, %s42
      %s43 = sphi 0, %s40
      %s44 = sphi 0, %s43
      %s60 = sphi 0, %s44
      %s66 = sphi 0, %s68
      %s69 = sphi 0, %s66
      %s70 = sphi 0, %s69
      %s86 = sphi 0, %s70
      %s92 = sphi 0, %s94
      %s95 = sphi 0, %s92
      %s96 = sphi 0, %s95
      %s112 = sphi 0, %s96
      %s118 = sphi 0, %s120
      %s121 = sphi 0, %s118
      %s122 = sphi 0, %s121
      %s138 = sphi 0, %s122
      %s142 = sphi 0, %s142
      %s144 = sphi 0, %s142
      %s145 = sphi 0, %s144
      %s159 = sphi 0, %s145
      %s163 = sphi 0, %s163
      %s165 = sphi 0, %s163
      %s166 = sphi 0, %s165
      %s180 = sphi 0, %s166
      %s184 = sphi 0, %s184
      %s186 = sphi 0, %s184
      %s187 = sphi 0, %s186
      %s201 = sphi 0, %s187
      %s205 = sphi 0, %s205
      %s207 = sphi 0, %s205
      %s208 = sphi 0, %s207
      %s222 = sphi 0, %s208
      %s226 = sphi 0, %s226
      %s228 = sphi 0, %s226
      %s229 = sphi 0, %s228
      %s243 = sphi 0, %s229
      %s247 = sphi 0, %s247
      %s249 = sphi 0, %s247
      %s250 = sphi 0, %s249
      %s264 = sphi 0, %s250
      %s268 = sphi 0, %s268
      %s270 = sphi 0, %s268
      %s271 = sphi 0, %s270
      %s285 = sphi 0, %s271
      %s289 = sphi 0, %s289
      %s291 = sphi 0, %s289
      %s292 = sphi 0, %s291
      %s306 = sphi 0, %s292
      %s312 = sphi 0, %s314
      %s315 = sphi 0, %s312
      %s316 = sphi 0, %s315
      %s332 = sphi 0, %s316
      %s338 = sphi 0, %s340
      %s341 = sphi 0, %s338
      %s342 = sphi 0, %s341
      %s358 = sphi 0, %s342
      %s364 = sphi 0, %s366
      %s367 = sphi 0, %s364
      %s368 = sphi 0, %s367
      %s384 = sphi 0, %s368
    $region4: #{tpu_custom_call.1} parent=1 // loop_header_branch
      %33 = sbr.rel (%p31) target = $region8
    $region5: #{tpu_custom_call.1} parent=1 // loop_body
      %s35 = ssub.s32 %s30, 1
      %s36 = ssub.s32 %s30, 2
      %s37 = sadd.s32 %s30, 1
      %s38 = ssub.s32 %s30, %s37
      %p39 = scmp.eq.s32.totalorder %s38, 0
      %s41 = sadd.s32 %s40, 1
      %s42 = scalar_select %p39, %s40, %s41
      %p45 = pneg %p39
      %p46 = scmp.eq.s32.totalorder %s30, 1
      %p47 = por %p45, %p46
      %p48 = scmp.ne.s32.totalorder %s40, %s43
      %p49 = scmp.eq.s32.totalorder %s30, 0
      %p50 = por %p48, %p49
      %p51 = scmp.ne.s32.totalorder %s40, %s43
      %p52 = scmp.eq.s32.totalorder %s35, 1
      %p53 = por %p51, %p52
      %p54 = scmp.ne.s32.totalorder %s43, %s44
      %p55 = scmp.eq.s32.totalorder %s35, 0
      %p56 = por %p54, %p55
      %p57 = scmp.ne.s32.totalorder %s43, %s44
      %p58 = scmp.eq.s32.totalorder %s36, 1
      %p59 = por %p57, %p58
      %p61 = scmp.ne.s32.totalorder %s44, %s60
      %p62 = scmp.eq.s32.totalorder %s36, 0
      %p63 = por %p61, %p62
      %s64 = ssub.s32 %s30, %s37
      %p65 = scmp.eq.s32.totalorder %s64, 0
      %s67 = sadd.s32 %s66, 1
      %s68 = scalar_select %p65, %s66, %s67
      %p71 = pneg %p65
      %p72 = scmp.eq.s32.totalorder %s30, 1
      %p73 = por %p71, %p72
      %p74 = scmp.ne.s32.totalorder %s66, %s69
      %p75 = scmp.eq.s32.totalorder %s30, 0
      %p76 = por %p74, %p75
      %p77 = scmp.ne.s32.totalorder %s66, %s69
      %p78 = scmp.eq.s32.totalorder %s35, 1
      %p79 = por %p77, %p78
      %p80 = scmp.ne.s32.totalorder %s69, %s70
      %p81 = scmp.eq.s32.totalorder %s35, 0
      %p82 = por %p80, %p81
      %p83 = scmp.ne.s32.totalorder %s69, %s70
      %p84 = scmp.eq.s32.totalorder %s36, 1
      %p85 = por %p83, %p84
      %p87 = scmp.ne.s32.totalorder %s70, %s86
      %p88 = scmp.eq.s32.totalorder %s36, 0
      %p89 = por %p87, %p88
      %s90 = ssub.s32 %s30, %s37
      %p91 = scmp.eq.s32.totalorder %s90, 0
      %s93 = sadd.s32 %s92, 1
      %s94 = scalar_select %p91, %s92, %s93
      %p97 = pneg %p91
      %p98 = scmp.eq.s32.totalorder %s30, 1
      %p99 = por %p97, %p98
      %p100 = scmp.ne.s32.totalorder %s92, %s95
      %p101 = scmp.eq.s32.totalorder %s30, 0
      %p102 = por %p100, %p101
      %p103 = scmp.ne.s32.totalorder %s92, %s95
      %p104 = scmp.eq.s32.totalorder %s35, 1
      %p105 = por %p103, %p104
      %p106 = scmp.ne.s32.totalorder %s95, %s96
      %p107 = scmp.eq.s32.totalorder %s35, 0
      %p108 = por %p106, %p107
      %p109 = scmp.ne.s32.totalorder %s95, %s96
      %p110 = scmp.eq.s32.totalorder %s36, 1
      %p111 = por %p109, %p110
      %p113 = scmp.ne.s32.totalorder %s96, %s112
      %p114 = scmp.eq.s32.totalorder %s36, 0
      %p115 = por %p113, %p114
      %s116 = ssub.s32 %s30, %s37
      %p117 = scmp.eq.s32.totalorder %s116, 0
      %s119 = sadd.s32 %s118, 1
      %s120 = scalar_select %p117, %s118, %s119
      %p123 = pneg %p117
      %p124 = scmp.eq.s32.totalorder %s30, 1
      %p125 = por %p123, %p124
      %p126 = scmp.ne.s32.totalorder %s118, %s121
      %p127 = scmp.eq.s32.totalorder %s30, 0
      %p128 = por %p126, %p127
      %p129 = scmp.ne.s32.totalorder %s118, %s121
      %p130 = scmp.eq.s32.totalorder %s35, 1
      %p131 = por %p129, %p130
      %p132 = scmp.ne.s32.totalorder %s121, %s122
      %p133 = scmp.eq.s32.totalorder %s35, 0
      %p134 = por %p132, %p133
      %p135 = scmp.ne.s32.totalorder %s121, %s122
      %p136 = scmp.eq.s32.totalorder %s36, 1
      %p137 = por %p135, %p136
      %p139 = scmp.ne.s32.totalorder %s122, %s138
      %p140 = scmp.eq.s32.totalorder %s36, 0
      %p141 = por %p139, %p140
      %s143 = sadd.s32 %s142, 1
      %p146 = scmp.eq.s32.totalorder %s30, 1
      %p147 = scmp.ne.s32.totalorder %s142, %s144
      %p148 = scmp.eq.s32.totalorder %s30, 0
      %p149 = por %p147, %p148
      %p150 = scmp.ne.s32.totalorder %s142, %s144
      %p151 = scmp.eq.s32.totalorder %s35, 1
      %p152 = por %p150, %p151
      %p153 = scmp.ne.s32.totalorder %s144, %s145
      %p154 = scmp.eq.s32.totalorder %s35, 0
      %p155 = por %p153, %p154
      %p156 = scmp.ne.s32.totalorder %s144, %s145
      %p157 = scmp.eq.s32.totalorder %s36, 1
      %p158 = por %p156, %p157
      %p160 = scmp.ne.s32.totalorder %s145, %s159
      %p161 = scmp.eq.s32.totalorder %s36, 0
      %p162 = por %p160, %p161
      %s164 = sadd.s32 %s163, 1
      %p167 = scmp.eq.s32.totalorder %s30, 1
      %p168 = scmp.ne.s32.totalorder %s163, %s165
      %p169 = scmp.eq.s32.totalorder %s30, 0
      %p170 = por %p168, %p169
      %p171 = scmp.ne.s32.totalorder %s163, %s165
      %p172 = scmp.eq.s32.totalorder %s35, 1
      %p173 = por %p171, %p172
      %p174 = scmp.ne.s32.totalorder %s165, %s166
      %p175 = scmp.eq.s32.totalorder %s35, 0
      %p176 = por %p174, %p175
      %p177 = scmp.ne.s32.totalorder %s165, %s166
      %p178 = scmp.eq.s32.totalorder %s36, 1
      %p179 = por %p177, %p178
      %p181 = scmp.ne.s32.totalorder %s166, %s180
      %p182 = scmp.eq.s32.totalorder %s36, 0
      %p183 = por %p181, %p182
      %s185 = sadd.s32 %s184, 1
      %p188 = scmp.eq.s32.totalorder %s30, 1
      %p189 = scmp.ne.s32.totalorder %s184, %s186
      %p190 = scmp.eq.s32.totalorder %s30, 0
      %p191 = por %p189, %p190
      %p192 = scmp.ne.s32.totalorder %s184, %s186
      %p193 = scmp.eq.s32.totalorder %s35, 1
      %p194 = por %p192, %p193
      %p195 = scmp.ne.s32.totalorder %s186, %s187
      %p196 = scmp.eq.s32.totalorder %s35, 0
      %p197 = por %p195, %p196
      %p198 = scmp.ne.s32.totalorder %s186, %s187
      %p199 = scmp.eq.s32.totalorder %s36, 1
      %p200 = por %p198, %p199
      %p202 = scmp.ne.s32.totalorder %s187, %s201
      %p203 = scmp.eq.s32.totalorder %s36, 0
      %p204 = por %p202, %p203
      %s206 = sadd.s32 %s205, 1
      %p209 = scmp.eq.s32.totalorder %s30, 1
      %p210 = scmp.ne.s32.totalorder %s205, %s207
      %p211 = scmp.eq.s32.totalorder %s30, 0
      %p212 = por %p210, %p211
      %p213 = scmp.ne.s32.totalorder %s205, %s207
      %p214 = scmp.eq.s32.totalorder %s35, 1
      %p215 = por %p213, %p214
      %p216 = scmp.ne.s32.totalorder %s207, %s208
      %p217 = scmp.eq.s32.totalorder %s35, 0
      %p218 = por %p216, %p217
      %p219 = scmp.ne.s32.totalorder %s207, %s208
      %p220 = scmp.eq.s32.totalorder %s36, 1
      %p221 = por %p219, %p220
      %p223 = scmp.ne.s32.totalorder %s208, %s222
      %p224 = scmp.eq.s32.totalorder %s36, 0
      %p225 = por %p223, %p224
      %s227 = sadd.s32 %s226, 1
      %p230 = scmp.eq.s32.totalorder %s30, 1
      %p231 = scmp.ne.s32.totalorder %s226, %s228
      %p232 = scmp.eq.s32.totalorder %s30, 0
      %p233 = por %p231, %p232
      %p234 = scmp.ne.s32.totalorder %s226, %s228
      %p235 = scmp.eq.s32.totalorder %s35, 1
      %p236 = por %p234, %p235
      %p237 = scmp.ne.s32.totalorder %s228, %s229
      %p238 = scmp.eq.s32.totalorder %s35, 0
      %p239 = por %p237, %p238
      %p240 = scmp.ne.s32.totalorder %s228, %s229
      %p241 = scmp.eq.s32.totalorder %s36, 1
      %p242 = por %p240, %p241
      %p244 = scmp.ne.s32.totalorder %s229, %s243
      %p245 = scmp.eq.s32.totalorder %s36, 0
      %p246 = por %p244, %p245
      %s248 = sadd.s32 %s247, 1
      %p251 = scmp.eq.s32.totalorder %s30, 1
      %p252 = scmp.ne.s32.totalorder %s247, %s249
      %p253 = scmp.eq.s32.totalorder %s30, 0
      %p254 = por %p252, %p253
      %p255 = scmp.ne.s32.totalorder %s247, %s249
      %p256 = scmp.eq.s32.totalorder %s35, 1
      %p257 = por %p255, %p256
      %p258 = scmp.ne.s32.totalorder %s249, %s250
      %p259 = scmp.eq.s32.totalorder %s35, 0
      %p260 = por %p258, %p259
      %p261 = scmp.ne.s32.totalorder %s249, %s250
      %p262 = scmp.eq.s32.totalorder %s36, 1
      %p263 = por %p261, %p262
      %p265 = scmp.ne.s32.totalorder %s250, %s264
      %p266 = scmp.eq.s32.totalorder %s36, 0
      %p267 = por %p265, %p266
      %s269 = sadd.s32 %s268, 1
      %p272 = scmp.eq.s32.totalorder %s30, 1
      %p273 = scmp.ne.s32.totalorder %s268, %s270
      %p274 = scmp.eq.s32.totalorder %s30, 0
      %p275 = por %p273, %p274
      %p276 = scmp.ne.s32.totalorder %s268, %s270
      %p277 = scmp.eq.s32.totalorder %s35, 1
      %p278 = por %p276, %p277
      %p279 = scmp.ne.s32.totalorder %s270, %s271
      %p280 = scmp.eq.s32.totalorder %s35, 0
      %p281 = por %p279, %p280
      %p282 = scmp.ne.s32.totalorder %s270, %s271
      %p283 = scmp.eq.s32.totalorder %s36, 1
      %p284 = por %p282, %p283
      %p286 = scmp.ne.s32.totalorder %s271, %s285
      %p287 = scmp.eq.s32.totalorder %s36, 0
      %p288 = por %p286, %p287
      %s290 = sadd.s32 %s289, 1
      %p293 = scmp.eq.s32.totalorder %s30, 1
      %p294 = scmp.ne.s32.totalorder %s289, %s291
      %p295 = scmp.eq.s32.totalorder %s30, 0
      %p296 = por %p294, %p295
      %p297 = scmp.ne.s32.totalorder %s289, %s291
      %p298 = scmp.eq.s32.totalorder %s35, 1
      %p299 = por %p297, %p298
      %p300 = scmp.ne.s32.totalorder %s291, %s292
      %p301 = scmp.eq.s32.totalorder %s35, 0
      %p302 = por %p300, %p301
      %p303 = scmp.ne.s32.totalorder %s291, %s292
      %p304 = scmp.eq.s32.totalorder %s36, 1
      %p305 = por %p303, %p304
      %p307 = scmp.ne.s32.totalorder %s292, %s306
      %p308 = scmp.eq.s32.totalorder %s36, 0
      %p309 = por %p307, %p308
      %s310 = ssub.s32 %s30, %s37
      %p311 = scmp.eq.s32.totalorder %s310, 0
      %s313 = sadd.s32 %s312, 1
      %s314 = scalar_select %p311, %s312, %s313
      %p317 = pneg %p311
      %p318 = scmp.eq.s32.totalorder %s30, 1
      %p319 = por %p317, %p318
      %p320 = scmp.ne.s32.totalorder %s312, %s315
      %p321 = scmp.eq.s32.totalorder %s30, 0
      %p322 = por %p320, %p321
      %p323 = scmp.ne.s32.totalorder %s312, %s315
      %p324 = scmp.eq.s32.totalorder %s35, 1
      %p325 = por %p323, %p324
      %p326 = scmp.ne.s32.totalorder %s315, %s316
      %p327 = scmp.eq.s32.totalorder %s35, 0
      %p328 = por %p326, %p327
      %p329 = scmp.ne.s32.totalorder %s315, %s316
      %p330 = scmp.eq.s32.totalorder %s36, 1
      %p331 = por %p329, %p330
      %p333 = scmp.ne.s32.totalorder %s316, %s332
      %p334 = scmp.eq.s32.totalorder %s36, 0
      %p335 = por %p333, %p334
      %s336 = ssub.s32 %s30, %s37
      %p337 = scmp.eq.s32.totalorder %s336, 0
      %s339 = sadd.s32 %s338, 1
      %s340 = scalar_select %p337, %s338, %s339
      %p343 = pneg %p337
      %p344 = scmp.eq.s32.totalorder %s30, 1
      %p345 = por %p343, %p344
      %p346 = scmp.ne.s32.totalorder %s338, %s341
      %p347 = scmp.eq.s32.totalorder %s30, 0
      %p348 = por %p346, %p347
      %p349 = scmp.ne.s32.totalorder %s338, %s341
      %p350 = scmp.eq.s32.totalorder %s35, 1
      %p351 = por %p349, %p350
      %p352 = scmp.ne.s32.totalorder %s341, %s342
      %p353 = scmp.eq.s32.totalorder %s35, 0
      %p354 = por %p352, %p353
      %p355 = scmp.ne.s32.totalorder %s341, %s342
      %p356 = scmp.eq.s32.totalorder %s36, 1
      %p357 = por %p355, %p356
      %p359 = scmp.ne.s32.totalorder %s342, %s358
      %p360 = scmp.eq.s32.totalorder %s36, 0
      %p361 = por %p359, %p360
      %s362 = ssub.s32 %s30, %s37
      %p363 = scmp.eq.s32.totalorder %s362, 0
      %s365 = sadd.s32 %s364, 1
      %s366 = scalar_select %p363, %s364, %s365
      %p369 = pneg %p363
      %p370 = scmp.eq.s32.totalorder %s30, 1
      %p371 = por %p369, %p370
      %p372 = scmp.ne.s32.totalorder %s364, %s367
      %p373 = scmp.eq.s32.totalorder %s30, 0
      %p374 = por %p372, %p373
      %p375 = scmp.ne.s32.totalorder %s364, %s367
      %p376 = scmp.eq.s32.totalorder %s35, 1
      %p377 = por %p375, %p376
      %p378 = scmp.ne.s32.totalorder %s367, %s368
      %p379 = scmp.eq.s32.totalorder %s35, 0
      %p380 = por %p378, %p379
      %p381 = scmp.ne.s32.totalorder %s367, %s368
      %p382 = scmp.eq.s32.totalorder %s36, 1
      %p383 = por %p381, %p382
      %p385 = scmp.ne.s32.totalorder %s368, %s384
      %p386 = scmp.eq.s32.totalorder %s36, 0
      %p387 = por %p385, %p386
      %p388 = scmp.le.s32.totalorder 1, %s30
      %p389 = scmp.lt.s32.totalorder %s30, 3
      %p390 = pnand %p388, %p389
      %p391 = pneg %p390
      // Predicated region
      $region9: #{tpu_custom_call.1} parent=5 // pred_check
        _
      $region10: #{tpu_custom_call.1} parent=5 // pred_check_branch
        %393 = sbr.rel (%p390) target = $region12
      $region11: #{tpu_custom_call.1} parent=5 // pred_region
        %s394 = ssub.s32 %s30, 1
        // Predicated region
        $region13: #{tpu_custom_call.1} parent=11 // pred_check
          %p395 = pneg %p155
        $region14: #{tpu_custom_call.1} parent=11 // pred_check_branch
          %397 = sbr.rel (%p395) target = $region16
        $region15: #{tpu_custom_call.1} parent=11 // pred_region
          %399 = vsyncadd [#allocation3], 0
          %s401 = sshll.u32 %s4, 4
          %s402 = int_to_ptr.hbm [resolvable:$true] %s401
          %s403 = sshll.u32 [#allocation2], 4
          %s404 = int_to_ptr.vmem [resolvable:$true] %s403
          %406 = dma.hbm_to_vmem [thread:$0]  %s402, 128, %s404, [#allocation3]
        $region16: #{tpu_custom_call.1} parent=11 // pred_fallthru
          _
        // Predicated region
        $region17: #{tpu_custom_call.1} parent=11 // pred_check
          %p407 = pneg %p176
        $region18: #{tpu_custom_call.1} parent=11 // pred_check_branch
          %409 = sbr.rel (%p407) target = $region20
        $region19: #{tpu_custom_call.1} parent=11 // pred_region
          %411 = vsyncadd [#allocation6], 0
          %s413 = sshll.u32 %s5, 4
          %s414 = int_to_ptr.hbm [resolvable:$true] %s413
          %s415 = sshll.u32 [#allocation5], 4
          %s416 = int_to_ptr.vmem [resolvable:$true] %s415
          %418 = dma.hbm_to_vmem [thread:$0]  %s414, 16, %s416, [#allocation6]
        $region20: #{tpu_custom_call.1} parent=11 // pred_fallthru
          _
        // Predicated region
        $region21: #{tpu_custom_call.1} parent=11 // pred_check
          %p419 = pneg %p197
        $region22: #{tpu_custom_call.1} parent=11 // pred_check_branch
          %421 = sbr.rel (%p419) target = $region24
        $region23: #{tpu_custom_call.1} parent=11 // pred_region
          %423 = vsyncadd [#allocation6], 0
          %s425 = sshll.u32 %s6, 4
          %s426 = int_to_ptr.hbm [resolvable:$true] %s425
          %s427 = sshll.u32 [#allocation7], 4
          %s428 = int_to_ptr.vmem [resolvable:$true] %s427
          %430 = dma.hbm_to_vmem [thread:$0]  %s426, 128, %s428, [#allocation6]
        $region24: #{tpu_custom_call.1} parent=11 // pred_fallthru
          _
        // Predicated region
        $region25: #{tpu_custom_call.1} parent=11 // pred_check
          %p431 = pneg %p218
        $region26: #{tpu_custom_call.1} parent=11 // pred_check_branch
          %433 = sbr.rel (%p431) target = $region28
        $region27: #{tpu_custom_call.1} parent=11 // pred_region
          %435 = vsyncadd [#allocation9], 0
          %s437 = sshll.u32 %s7, 4
          %s438 = int_to_ptr.hbm [resolvable:$true] %s437
          %s439 = sshll.u32 [#allocation8], 4
          %s440 = int_to_ptr.vmem [resolvable:$true] %s439
          %442 = dma.hbm_to_vmem [thread:$0]  %s438, 16, %s440, [#allocation9]
        $region28: #{tpu_custom_call.1} parent=11 // pred_fallthru
          _
        // Predicated region
        $region29: #{tpu_custom_call.1} parent=11 // pred_check
          %p443 = pneg %p239
        $region30: #{tpu_custom_call.1} parent=11 // pred_check_branch
          %445 = sbr.rel (%p443) target = $region32
        $region31: #{tpu_custom_call.1} parent=11 // pred_region
          _
        $region32: #{tpu_custom_call.1} parent=11 // pred_fallthru
          _
        // Predicated region
        $region33: #{tpu_custom_call.1} parent=11 // pred_check
          %p446 = pneg %p260
        $region34: #{tpu_custom_call.1} parent=11 // pred_check_branch
          %448 = sbr.rel (%p446) target = $region36
        $region35: #{tpu_custom_call.1} parent=11 // pred_region
          _
        $region36: #{tpu_custom_call.1} parent=11 // pred_fallthru
          _
        // Predicated region
        $region37: #{tpu_custom_call.1} parent=11 // pred_check
          %p449 = pneg %p281
        $region38: #{tpu_custom_call.1} parent=11 // pred_check_branch
          %451 = sbr.rel (%p449) target = $region40
        $region39: #{tpu_custom_call.1} parent=11 // pred_region
          %453 = vsyncadd [#allocation9], 0
          %s455 = sshll.u32 %s10, 4
          %s456 = int_to_ptr.hbm [resolvable:$true] %s455
          %s457 = sshll.u32 [#allocation10], 4
          %s458 = int_to_ptr.vmem [resolvable:$true] %s457
          %460 = dma.hbm_to_vmem [thread:$0]  %s456, 128, %s458, [#allocation9]
        $region40: #{tpu_custom_call.1} parent=11 // pred_fallthru
          _
        // Predicated region
        $region41: #{tpu_custom_call.1} parent=11 // pred_check
          %p461 = pneg %p302
        $region42: #{tpu_custom_call.1} parent=11 // pred_check_branch
          %463 = sbr.rel (%p461) target = $region44
        $region43: #{tpu_custom_call.1} parent=11 // pred_region
          _
        $region44: #{tpu_custom_call.1} parent=11 // pred_fallthru
          _
      $region12: #{tpu_custom_call.1} parent=5 // pred_fallthru
        _
      %p464 = scmp.lt.s32.totalorder %s30, 2
      // Predicated region
      $region45: #{tpu_custom_call.1} parent=5 // pred_check
        %p465 = pneg %p464
      $region46: #{tpu_custom_call.1} parent=5 // pred_check_branch
        %467 = sbr.rel (%p465) target = $region48
      $region47: #{tpu_custom_call.1} parent=5 // pred_region
        // Predicated region
        $region49: #{tpu_custom_call.1} parent=47 // pred_check
          %p468 = pneg %p50
        $region50: #{tpu_custom_call.1} parent=47 // pred_check_branch
          %470 = sbr.rel (%p468) target = $region52
        $region51: #{tpu_custom_call.1} parent=47 // pred_region
          %p471 = scmp.lt.s32.totalorder %s30, 1
          %s472 = scalar_select %p471, %s30, 1
          %s473 = smul.addr %s472, 8
          %s474 = scalar_lea.vmem %s0, %s473
        $region52: #{tpu_custom_call.1} parent=47 // pred_fallthru
          _
        // Predicated region
        $region53: #{tpu_custom_call.1} parent=47 // pred_check
          %p475 = pneg %p76
        $region54: #{tpu_custom_call.1} parent=47 // pred_check_branch
          %477 = sbr.rel (%p475) target = $region56
        $region55: #{tpu_custom_call.1} parent=47 // pred_region
          %p478 = scmp.lt.s32.totalorder %s30, 1
          %s479 = scalar_select %p478, %s30, 1
          %s480 = smul.addr %s479, 8
          %s481 = scalar_lea.vmem %s1, %s480
        $region56: #{tpu_custom_call.1} parent=47 // pred_fallthru
          _
        // Predicated region
        $region57: #{tpu_custom_call.1} parent=47 // pred_check
          %p482 = pneg %p102
        $region58: #{tpu_custom_call.1} parent=47 // pred_check_branch
          %484 = sbr.rel (%p482) target = $region60
        $region59: #{tpu_custom_call.1} parent=47 // pred_region
          %p485 = scmp.lt.s32.totalorder %s30, 1
          %s486 = scalar_select %p485, %s30, 1
          %s487 = smul.addr %s486, 8
          %s488 = scalar_lea.vmem %s2, %s487
        $region60: #{tpu_custom_call.1} parent=47 // pred_fallthru
          _
        // Predicated region
        $region61: #{tpu_custom_call.1} parent=47 // pred_check
          %p489 = pneg %p128
        $region62: #{tpu_custom_call.1} parent=47 // pred_check_branch
          %491 = sbr.rel (%p489) target = $region64
        $region63: #{tpu_custom_call.1} parent=47 // pred_region
          %p492 = scmp.lt.s32.totalorder %s30, 1
          %s493 = scalar_select %p492, %s30, 1
          %s494 = smul.addr %s493, 8
          %s495 = scalar_lea.vmem %s3, %s494
        $region64: #{tpu_custom_call.1} parent=47 // pred_fallthru
          _
      $region48: #{tpu_custom_call.1} parent=5 // pred_fallthru
        _
      %p496 = scmp.le.s32.totalorder 1, %s30
      %p497 = scmp.lt.s32.totalorder %s30, 3
      %p498 = pnand %p496, %p497
      %p499 = pneg %p498
      // Predicated region
      $region65: #{tpu_custom_call.1} parent=5 // pred_check
        _
      $region66: #{tpu_custom_call.1} parent=5 // pred_check_branch
        %501 = sbr.rel (%p498) target = $region68
      $region67: #{tpu_custom_call.1} parent=5 // pred_region
        %s502 = ssub.s32 %s30, 1
        // Predicated region
        $region69: #{tpu_custom_call.1} parent=67 // pred_check
          %p503 = pneg %p155
        $region70: #{tpu_custom_call.1} parent=67 // pred_check_branch
          %505 = sbr.rel (%p503) target = $region72
        $region71: #{tpu_custom_call.1} parent=67 // pred_region
          %507 = dma.done [#allocation3], 128
        $region72: #{tpu_custom_call.1} parent=67 // pred_fallthru
          _
        // Predicated region
        $region73: #{tpu_custom_call.1} parent=67 // pred_check
          %p508 = pneg %p176
        $region74: #{tpu_custom_call.1} parent=67 // pred_check_branch
          %510 = sbr.rel (%p508) target = $region76
        $region75: #{tpu_custom_call.1} parent=67 // pred_region
          %512 = dma.done [#allocation6], 16
        $region76: #{tpu_custom_call.1} parent=67 // pred_fallthru
          _
        // Predicated region
        $region77: #{tpu_custom_call.1} parent=67 // pred_check
          %p513 = pneg %p197
        $region78: #{tpu_custom_call.1} parent=67 // pred_check_branch
          %515 = sbr.rel (%p513) target = $region80
        $region79: #{tpu_custom_call.1} parent=67 // pred_region
          %517 = dma.done [#allocation6], 128
        $region80: #{tpu_custom_call.1} parent=67 // pred_fallthru
          _
        // Predicated region
        $region81: #{tpu_custom_call.1} parent=67 // pred_check
          %p518 = pneg %p218
        $region82: #{tpu_custom_call.1} parent=67 // pred_check_branch
          %520 = sbr.rel (%p518) target = $region84
        $region83: #{tpu_custom_call.1} parent=67 // pred_region
          %522 = dma.done [#allocation9], 16
        $region84: #{tpu_custom_call.1} parent=67 // pred_fallthru
          _
        // Predicated region
        $region85: #{tpu_custom_call.1} parent=67 // pred_check
          %p523 = pneg %p281
        $region86: #{tpu_custom_call.1} parent=67 // pred_check_branch
          %525 = sbr.rel (%p523) target = $region88
        $region87: #{tpu_custom_call.1} parent=67 // pred_region
          %527 = dma.done [#allocation9], 128
        $region88: #{tpu_custom_call.1} parent=67 // pred_fallthru
          _
        %p528 = scmp.lt.s32.totalorder %s35, 1
        %s529 = scalar_select %p528, %s35, 1
        %s530 = smul.addr %s529, 8
        %s531 = scalar_lea.vmem %s0, %s530
        %p532 = pneg %p56
        %p533 = pneg %p53
        %p534 = scmp.lt.s32.totalorder %s35, 1
        %s535 = scalar_select %p534, %s35, 1
        %s536 = smul.addr %s535, 8
        %s537 = scalar_lea.vmem %s1, %s536
        %p538 = pneg %p82
        %p539 = pneg %p79
        %p540 = scmp.lt.s32.totalorder %s35, 1
        %s541 = scalar_select %p540, %s35, 1
        %s542 = smul.addr %s541, 8
        %s543 = scalar_lea.vmem %s2, %s542
        %p544 = pneg %p108
        %p545 = pneg %p105
        %p546 = scmp.lt.s32.totalorder %s35, 1
        %s547 = scalar_select %p546, %s35, 1
        %s548 = smul.addr %s547, 8
        %s549 = scalar_lea.vmem %s3, %s548
        %p550 = pneg %p134
        %p551 = pneg %p131
        %p552 = pneg %p155
        %p553 = pneg %p152
        %p554 = pneg %p176
        %p555 = pneg %p173
        %p556 = pneg %p197
        %p557 = pneg %p194
        %p558 = pneg %p218
        %p559 = pneg %p215
        %p560 = pneg %p239
        %p561 = pneg %p236
        %p562 = pneg %p260
        %p563 = pneg %p257
        %p564 = pneg %p281
        %p565 = pneg %p278
        %p566 = pneg %p302
        %p567 = pneg %p299
        %p568 = pneg %p328
        %p569 = pneg %p325
        %s570 = sand.u32 %s315, 1
        %s571 = scalar_lea.sflag [#allocation4], %s570
        %s572 = sand.u32 %s315, 1
        %s573 = smul.addr %s572, 8
        %s574 = scalar_lea.vmem [#allocation11], %s573
        %p575 = pneg %p354
        %p576 = pneg %p351
        %s577 = sand.u32 %s35, 1
        %s578 = scalar_lea.sflag [#allocation13], %s577
        %s579 = sand.u32 %s341, 1
        %s580 = smul.addr %s579, 8
        %s581 = scalar_lea.vmem [#allocation12], %s580
        %p582 = pneg %p380
        %p583 = pneg %p377
        %s584 = sand.u32 %s35, 1
        %s585 = scalar_lea.sflag [#allocation13], %s584
        %s586 = sand.u32 %s367, 1
        %s587 = smul.addr %s586, 8
        %s588 = scalar_lea.vmem [#allocation14], %s587
        %p589 = scmp.lt.s32.totalorder %s35, 1
        %s590 = scalar_select %p589, %s35, 1
        %s591 = smul.addr %s590, 8
        %s592 = scalar_lea.vmem %s0, %s591
        %p593 = scmp.lt.s32.totalorder %s35, 1
        %s594 = scalar_select %p593, %s35, 1
        %s595 = smul.addr %s594, 8
        %s596 = scalar_lea.vmem %s1, %s595
        %p597 = scmp.lt.s32.totalorder %s35, 1
        %s598 = scalar_select %p597, %s35, 1
        %s599 = smul.addr %s598, 8
        %s600 = scalar_lea.vmem %s2, %s599
        %p601 = scmp.lt.s32.totalorder %s35, 1
        %s602 = scalar_select %p601, %s35, 1
        %s603 = smul.addr %s602, 8
        %s604 = scalar_lea.vmem %s3, %s603
        %v605 = vlaneseq
        %v606 = vshrl.u32 %v605, 7
        %v607 = vld [vmem:[%s596] sm:$0xff]
        %v608 = vld [vmem:[#allocation2] sm:$0xff]
        %v609 = vld [vmem:[#allocation5] sm:$0x1]
        %vm610 = vcmask 64512
        %v612 = vsel %vm610, %v607, 0
        %614 = vmatpush.msra.mxu0 0.0
        %615 = vmatpush.msra.mxu0 0.0
        %616 = vmatpush.msra.mxu0 0.0
        %617 = vmatpush.msra.mxu0 0.0
        %618 = vmatpush.msra.mxu0 0.0
        %619 = vmatpush.msra.mxu0 0.0
        %620 = vmatpush.msra.mxu0 0.0
        %621 = vmatpush.msra.mxu0 0.0
        %622 = vmatpush.msra.mxu0 0.0
        %623 = vmatpush.msra.mxu0 0.0
        %624 = vmatpush.msra.mxu0 0.0
        %625 = vmatpush.msra.mxu0 0.0
        %626 = vmatpush.msra.mxu0 0.0
        %627 = vmatpush.msra.mxu0 0.0
        %628 = vmatpush.msra.mxu0 0.0
        %629 = vmatpush.msra.mxu0 %v608
        %630 = vmatmul.f32.gmra.mxu0 %v612
        %v631 = vpop.f32.mrf.mxu0
        %v632 = vadd.f32 0.0, %v631
        %633 = vdwg.mxu0
        %vm634 = vcmp.gt.s32.totalorder %v606, 0
        %v635 = vrot.slane %v632, 7
        %v636 = vsel %vm634, 1, 0
        %vm637 = vcmp.eq.s32.totalorder %v636, 1
        %v638 = vsel %vm637, %v635, 0.0
        %640 = vrot.lane.b32.xlu0 %v632, 120
        %v641 = vpop.permute.xlu0 %640
        %v643 = vadd.f32 %v638, %v641
        %vm644 = vcmp.lt.s32.totalorder %v606, 7
        %645 = vrot.lane.b32.xlu0 %v632, 112
        %v646 = vpop.permute.xlu0 %645
        %v648 = vrot.slane %v646, 1
        %v649 = vsel %vm644, 1, 0
        %vm650 = vcmp.eq.s32.totalorder %v649, 1
        %v651 = vsel %vm650, %v648, 0.0
        %v652 = vadd.f32 %v643, %v651
        %v654 = vperm.slane %v609, 0
        %v656 = vadd.f32 %v652, %v654
        %v657 = vmax.f32 %v656, 0.0
        %v658 = vld [vmem:[%s600] sm:$0xff]
        %660 = vset.pattern.permute.xlu0 0
        %661 = vperm.xlu0 %660, %v658
        %v662 = vpop.permute.xlu0 %661
        %v664 = vmul.f32 %v657, %v662
        %665 = vst.msk [vmem:[%s574] sm:$0xff] %vm610, %v664
        %v666 = vld [vmem:[%s592] sm:$0xff]
        %v667 = vld [vmem:[#allocation7] sm:$0xff]
        %v668 = vld [vmem:[#allocation8] sm:$0x1]
        %v669 = vld [vmem:[%s8] sm:$0xff]
        %v670 = vld [vmem:[%s9] sm:$0x1]
        %v671 = vld [vmem:[#allocation10] sm:$0xff]
        %v672 = vld [vmem:[%s11] sm:$0x1]
        %v674 = vsel %vm610, %v666, 0
        %676 = vmatpush.msra.mxu0 0.0
        %677 = vmatpush.msra.mxu0 0.0
        %678 = vmatpush.msra.mxu0 0.0
        %679 = vmatpush.msra.mxu0 0.0
        %680 = vmatpush.msra.mxu0 0.0
        %681 = vmatpush.msra.mxu0 0.0
        %682 = vmatpush.msra.mxu0 0.0
        %683 = vmatpush.msra.mxu0 0.0
        %684 = vmatpush.msra.mxu0 0.0
        %685 = vmatpush.msra.mxu0 0.0
        %686 = vmatpush.msra.mxu0 0.0
        %687 = vmatpush.msra.mxu0 0.0
        %688 = vmatpush.msra.mxu0 0.0
        %689 = vmatpush.msra.mxu0 0.0
        %690 = vmatpush.msra.mxu0 0.0
        %691 = vmatpush.msra.mxu0 %v667
        %692 = vmatmul.f32.gmra.mxu0 %v674
        %v693 = vpop.f32.mrf.mxu0
        %v694 = vadd.f32 0.0, %v693
        %695 = vdwg.mxu0
        %696 = vrot.lane.b32.xlu0 %v666, 120
        %v697 = vpop.permute.xlu0 %696
        %v698 = vsel %vm610, %v697, 0
        %700 = vmatpush.msra.mxu0 0.0
        %701 = vmatpush.msra.mxu0 0.0
        %702 = vmatpush.msra.mxu0 0.0
        %703 = vmatpush.msra.mxu0 0.0
        %704 = vmatpush.msra.mxu0 0.0
        %705 = vmatpush.msra.mxu0 0.0
        %706 = vmatpush.msra.mxu0 0.0
        %707 = vmatpush.msra.mxu0 0.0
        %708 = vmatpush.msra.mxu0 0.0
        %709 = vmatpush.msra.mxu0 0.0
        %710 = vmatpush.msra.mxu0 0.0
        %711 = vmatpush.msra.mxu0 0.0
        %712 = vmatpush.msra.mxu0 0.0
        %713 = vmatpush.msra.mxu0 0.0
        %714 = vmatpush.msra.mxu0 0.0
        %715 = vmatpush.msra.mxu0 %v667
        %716 = vmatmul.f32.gmra.mxu0 %v698
        %v717 = vpop.f32.mrf.mxu0
        %v718 = vadd.f32 0.0, %v717
        %719 = vdwg.mxu0
        %v720 = vrot.slane %v718, 7
        %v721 = vsel %vm637, %v720, 0.0
        %723 = vrot.lane.b32.xlu0 %v694, 120
        %v724 = vpop.permute.xlu0 %723
        %v726 = vadd.f32 %v721, %v724
        %728 = vrot.lane.b32.xlu0 %v718, 112
        %v729 = vpop.permute.xlu0 %728
        %v731 = vadd.f32 %v726, %v729
        %v733 = vperm.slane %v668, 0
        %v735 = vadd.f32 %v731, %v733
        %736 = vrot.lane.b32.xlu0 %v718, 120
        %v737 = vpop.permute.xlu0 %736
        %v739 = vadd.f32 %v694, %v737
        %740 = vrot.lane.b32.xlu0 %v694, 112
        %v741 = vpop.permute.xlu0 %740
        %v743 = vrot.slane %v741, 1
        %v744 = vsel %vm650, %v743, 0.0
        %v745 = vadd.f32 %v739, %v744
        %v746 = vadd.f32 %v745, %v733
        %v748 = vsel %vm610, %v657, 0
        %750 = vmatpush.msra.mxu0 0.0
        %751 = vmatpush.msra.mxu0 0.0
        %752 = vmatpush.msra.mxu0 0.0
        %753 = vmatpush.msra.mxu0 0.0
        %754 = vmatpush.msra.mxu0 0.0
        %755 = vmatpush.msra.mxu0 0.0
        %756 = vmatpush.msra.mxu0 0.0
        %757 = vmatpush.msra.mxu0 0.0
        %758 = vmatpush.msra.mxu0 0.0
        %759 = vmatpush.msra.mxu0 0.0
        %760 = vmatpush.msra.mxu0 0.0
        %761 = vmatpush.msra.mxu0 0.0
        %762 = vmatpush.msra.mxu0 0.0
        %763 = vmatpush.msra.mxu0 0.0
        %764 = vmatpush.msra.mxu0 0.0
        %765 = vmatpush.msra.mxu0 %v669
        %766 = vmatmul.f32.gmra.mxu0 %v748
        %v767 = vpop.f32.mrf.mxu0
        %v768 = vadd.f32 0.0, %v767
        %769 = vdwg.mxu0
        %v771 = vperm.slane %v670, 0
        %772 = vrot.lane.b32.xlu0 %v771, 8
        %v773 = vpop.permute.xlu0 %772
        %v775 = vadd.f32 %v768, %v773
        %v776 = vrot.slane %v768, 1
        %v777 = vsel %vm650, %v776, 0.0
        %779 = vrot.lane.b32.xlu0 %v777, 16
        %v780 = vpop.permute.xlu0 %779
        %v782 = vadd.f32 %v768, %v780
        %783 = vrot.lane.b32.xlu0 %v771, 16
        %v784 = vpop.permute.xlu0 %783
        %v786 = vadd.f32 %v782, %v784
        %v787 = vmax.f32 %v735, 0.0
        %v788 = vmax.f32 %v775, 0.0
        %790 = vrot.lane.b32.xlu0 %v788, 120
        %v791 = vpop.permute.xlu0 %790
        %v793 = vadd.f32 %v787, %v791
        %v794 = vmax.f32 %v746, 0.0
        %v795 = vmax.f32 %v786, 0.0
        %797 = vrot.lane.b32.xlu0 %v795, 112
        %v798 = vpop.permute.xlu0 %797
        %v800 = vadd.f32 %v794, %v798
        %v802 = vsel %vm610, %v793, 0
        %804 = vmatpush.msra.mxu0 0.0
        %805 = vmatpush.msra.mxu0 0.0
        %806 = vmatpush.msra.mxu0 0.0
        %807 = vmatpush.msra.mxu0 0.0
        %808 = vmatpush.msra.mxu0 0.0
        %809 = vmatpush.msra.mxu0 0.0
        %810 = vmatpush.msra.mxu0 0.0
        %811 = vmatpush.msra.mxu0 0.0
        %812 = vmatpush.msra.mxu0 0.0
        %813 = vmatpush.msra.mxu0 0.0
        %814 = vmatpush.msra.mxu0 0.0
        %815 = vmatpush.msra.mxu0 0.0
        %816 = vmatpush.msra.mxu0 0.0
        %817 = vmatpush.msra.mxu0 0.0
        %818 = vmatpush.msra.mxu0 0.0
        %819 = vmatpush.msra.mxu0 %v671
        %820 = vmatmul.f32.gmra.mxu0 %v802
        %v821 = vpop.f32.mrf.mxu0
        %v822 = vadd.f32 0.0, %v821
        %823 = vdwg.mxu0
        %v825 = vsel %vm610, %v800, 0
        %827 = vmatpush.msra.mxu0 0.0
        %828 = vmatpush.msra.mxu0 0.0
        %829 = vmatpush.msra.mxu0 0.0
        %830 = vmatpush.msra.mxu0 0.0
        %831 = vmatpush.msra.mxu0 0.0
        %832 = vmatpush.msra.mxu0 0.0
        %833 = vmatpush.msra.mxu0 0.0
        %834 = vmatpush.msra.mxu0 0.0
        %835 = vmatpush.msra.mxu0 0.0
        %836 = vmatpush.msra.mxu0 0.0
        %837 = vmatpush.msra.mxu0 0.0
        %838 = vmatpush.msra.mxu0 0.0
        %839 = vmatpush.msra.mxu0 0.0
        %840 = vmatpush.msra.mxu0 0.0
        %841 = vmatpush.msra.mxu0 0.0
        %842 = vmatpush.msra.mxu0 %v671
        %843 = vmatmul.f32.gmra.mxu0 %v825
        %v844 = vpop.f32.mrf.mxu0
        %v845 = vadd.f32 0.0, %v844
        %846 = vdwg.mxu0
        %v847 = vrot.slane %v845, 7
        %v848 = vsel %vm637, %v847, 0.0
        %850 = vrot.lane.b32.xlu0 %v822, 120
        %v851 = vpop.permute.xlu0 %850
        %v853 = vadd.f32 %v848, %v851
        %855 = vrot.lane.b32.xlu0 %v845, 112
        %v856 = vpop.permute.xlu0 %855
        %v858 = vadd.f32 %v853, %v856
        %v860 = vperm.slane %v672, 0
        %v862 = vadd.f32 %v858, %v860
        %863 = vrot.lane.b32.xlu0 %v845, 120
        %v864 = vpop.permute.xlu0 %863
        %v866 = vadd.f32 %v822, %v864
        %867 = vrot.lane.b32.xlu0 %v822, 112
        %v868 = vpop.permute.xlu0 %867
        %v870 = vrot.slane %v868, 1
        %v871 = vsel %vm650, %v870, 0.0
        %v872 = vadd.f32 %v866, %v871
        %v873 = vadd.f32 %v872, %v860
        %v874 = vmax.f32 %v862, 0.0
        %v875 = vmax.f32 %v873, 0.0
        %877 = vrot.lane.b32.xlu0 %v875, 8
        %v878 = vpop.permute.xlu0 %877
        %v880 = vsel %vm610, %v874, %v878
        %vm881 = vcmask 130048
        %882 = vst.msk [vmem:[%s581] sm:$0xff] %vm881, %v880
        %v883 = vld [vmem:[%s604] sm:$0xff]
        %885 = vset.pattern.permute.xlu0 0
        %886 = vperm.xlu0 %885, %v883
        %v887 = vpop.permute.xlu0 %886
        %v889 = vmul.f32 %v874, %v887
        %890 = vset.pattern.permute.xlu0 1
        %891 = vperm.xlu0 %890, %v883
        %v892 = vpop.permute.xlu0 %891
        %v894 = vmul.f32 %v875, %v892
        %896 = vrot.lane.b32.xlu0 %v894, 8
        %v897 = vpop.permute.xlu0 %896
        %v899 = vsel %vm610, %v889, %v897
        %900 = vst.msk [vmem:[%s588] sm:$0xff] %vm881, %v899
        %s901 = sand.u32 %s315, 1
        %s902 = scalar_lea.sflag [#allocation4], %s901
        %s903 = sand.u32 %s315, 1
        %s904 = smul.addr %s903, 8
        %s905 = scalar_lea.vmem [#allocation11], %s904
        %s906 = sand.u32 %s35, 1
        %s907 = scalar_lea.sflag [#allocation13], %s906
        %s908 = sand.u32 %s341, 1
        %s909 = smul.addr %s908, 8
        %s910 = scalar_lea.vmem [#allocation12], %s909
        %s911 = sand.u32 %s35, 1
        %s912 = scalar_lea.sflag [#allocation13], %s911
        %s913 = sand.u32 %s367, 1
        %s914 = smul.addr %s913, 8
        %s915 = scalar_lea.vmem [#allocation14], %s914
        // Predicated region
        $region89: #{tpu_custom_call.1} parent=67 // pred_check
          %p916 = pneg %p325
        $region90: #{tpu_custom_call.1} parent=67 // pred_check_branch
          %918 = sbr.rel (%p916) target = $region92
        $region91: #{tpu_custom_call.1} parent=67 // pred_region
          %920 = vsyncadd %s902, 0
          %s921 = smul.addr %s35, 8
          %s922 = scalar_lea.hbm %s12, %s921
          %s924 = sshll.u32 %s905, 4
          %s925 = int_to_ptr.vmem [resolvable:$true] %s924
          %s926 = sshll.u32 %s922, 4
          %s927 = int_to_ptr.hbm [resolvable:$true] %s926
          %929 = dma.vmem_to_hbm [thread:$0]  %s925, 128, %s927, %s902
        $region92: #{tpu_custom_call.1} parent=67 // pred_fallthru
          _
        // Predicated region
        $region93: #{tpu_custom_call.1} parent=67 // pred_check
          %p930 = pneg %p351
        $region94: #{tpu_custom_call.1} parent=67 // pred_check_branch
          %932 = sbr.rel (%p930) target = $region96
        $region95: #{tpu_custom_call.1} parent=67 // pred_region
          %934 = vsyncadd %s907, 0
          %s935 = smul.addr %s35, 8
          %s936 = scalar_lea.hbm %s13, %s935
          %s938 = sshll.u32 %s910, 4
          %s939 = int_to_ptr.vmem [resolvable:$true] %s938
          %s940 = sshll.u32 %s936, 4
          %s941 = int_to_ptr.hbm [resolvable:$true] %s940
          %943 = dma.vmem_to_hbm [thread:$0]  %s939, 128, %s941, %s907
        $region96: #{tpu_custom_call.1} parent=67 // pred_fallthru
          _
        // Predicated region
        $region97: #{tpu_custom_call.1} parent=67 // pred_check
          %p944 = pneg %p377
        $region98: #{tpu_custom_call.1} parent=67 // pred_check_branch
          %946 = sbr.rel (%p944) target = $region100
        $region99: #{tpu_custom_call.1} parent=67 // pred_region
          %948 = vsyncadd %s912, 0
          %s949 = smul.addr %s35, 8
          %s950 = scalar_lea.hbm %s14, %s949
          %s952 = sshll.u32 %s915, 4
          %s953 = int_to_ptr.vmem [resolvable:$true] %s952
          %s954 = sshll.u32 %s950, 4
          %s955 = int_to_ptr.hbm [resolvable:$true] %s954
          %957 = dma.vmem_to_hbm [thread:$0]  %s953, 128, %s955, %s912
        $region100: #{tpu_custom_call.1} parent=67 // pred_fallthru
          _
      $region68: #{tpu_custom_call.1} parent=5 // pred_fallthru
        _
      %p958 = scmp.le.s32.totalorder 2, %s30
      // Predicated region
      $region101: #{tpu_custom_call.1} parent=5 // pred_check
        %p959 = pneg %p958
      $region102: #{tpu_custom_call.1} parent=5 // pred_check_branch
        %961 = sbr.rel (%p959) target = $region104
      $region103: #{tpu_custom_call.1} parent=5 // pred_region
        %s962 = ssub.s32 %s30, 2
        // Predicated region
        $region105: #{tpu_custom_call.1} parent=103 // pred_check
          %p963 = pneg %p331
        $region106: #{tpu_custom_call.1} parent=103 // pred_check_branch
          %965 = sbr.rel (%p963) target = $region108
        $region107: #{tpu_custom_call.1} parent=103 // pred_region
          %s966 = sand.u32 %s316, 1
          %s967 = scalar_lea.sflag [#allocation4], %s966
          %s968 = sand.u32 %s316, 1
          %s969 = smul.addr %s968, 8
          %s970 = scalar_lea.vmem [#allocation11], %s969
          %972 = dma.done %s967, 128
        $region108: #{tpu_custom_call.1} parent=103 // pred_fallthru
          _
        // Predicated region
        $region109: #{tpu_custom_call.1} parent=103 // pred_check
          %p973 = pneg %p357
        $region110: #{tpu_custom_call.1} parent=103 // pred_check_branch
          %975 = sbr.rel (%p973) target = $region112
        $region111: #{tpu_custom_call.1} parent=103 // pred_region
          %s976 = sand.u32 %s36, 1
          %s977 = scalar_lea.sflag [#allocation13], %s976
          %s978 = sand.u32 %s342, 1
          %s979 = smul.addr %s978, 8
          %s980 = scalar_lea.vmem [#allocation12], %s979
          %982 = dma.done %s977, 128
        $region112: #{tpu_custom_call.1} parent=103 // pred_fallthru
          _
        // Predicated region
        $region113: #{tpu_custom_call.1} parent=103 // pred_check
          %p983 = pneg %p383
        $region114: #{tpu_custom_call.1} parent=103 // pred_check_branch
          %985 = sbr.rel (%p983) target = $region116
        $region115: #{tpu_custom_call.1} parent=103 // pred_region
          %s986 = sand.u32 %s36, 1
          %s987 = scalar_lea.sflag [#allocation13], %s986
          %s988 = sand.u32 %s368, 1
          %s989 = smul.addr %s988, 8
          %s990 = scalar_lea.vmem [#allocation14], %s989
          %992 = dma.done %s987, 128
        $region116: #{tpu_custom_call.1} parent=103 // pred_fallthru
          _
      $region104: #{tpu_custom_call.1} parent=5 // pred_fallthru
        _
    $region6: #{tpu_custom_call.1} parent=1 // loop_footer
      %s34 = sadd.s32 1, %s30
    $region7: #{tpu_custom_call.1} parent=1 // loop_footer_branch
      %29 = sbr.rel target = $region3
    $region8: #{tpu_custom_call.1} parent=1 // loop_exit
      _
    %993 = vsyncpa [#allocation3], 1
    %s994 = scalar_lea.sflag [#allocation3], 1
    %995 = vsyncpa %s994, 1
    %996 = vsyncpa [#allocation6], 1
    %997 = vsyncpa [#allocation9], 1
    %998 = vsyncpa [#allocation4], 1
    %s999 = scalar_lea.sflag [#allocation4], 1
    %1000 = vsyncpa %s999, 1
    %1001 = vsyncpa [#allocation13], 1
    %s1002 = scalar_lea.sflag [#allocation13], 1
    %1003 = vsyncpa %s1002, 1

</llo_original>
